<compile_context>
chip_gen: v6e
topology: v6e:2x2x1
jax: 0.10.0
libtpu: 0.0.40
codegen_flags: <defaults>
</compile_context>

<pallas_src>
import functools
import numpy as np

import jax
import jax.numpy as jnp
from jax import lax
from jax.experimental import pallas as pl
from jax.experimental.pallas import tpu as pltpu


# ----------------------------------------------------------------------------
# Pallas kernel: one grid step == TB windows (TB of the B*D batch elements).
# ----------------------------------------------------------------------------
def _window_attn_kernel(scale_ref, x_ref, w_ref, bias_ref, o_ref, *,
                        num_heads, head_dim, tb, n_tok):
    # x_ref:    (TB, N, C)  VMEM, native dtype
    # w_ref:    (C, 3C)     VMEM, bf16 (resident across grid steps)
    # bias_ref: (H, N, N)   VMEM, f32  (resident across grid steps)
    # scale_ref:(H,)        SMEM, f32  (exp(clamped logit_scale) per head)
    # o_ref:    (TB, N, C)  VMEM
    C = num_heads * head_dim
    n = n_tok

    # One big QKV projection for all TB windows: (TB*N, C) @ (C, 3C) on the MXU.
    x = x_ref[...].reshape(tb * n, C).astype(jnp.bfloat16)
    w = w_ref[...]                                              # bf16
    qkv = jnp.dot(x, w, preferred_element_type=jnp.float32)    # (TB*N, 3C) f32

    def l2_normalize(a):
        # F.normalize(..., dim=-1, eps=1e-12): a / max(||a||, eps)
        #   == a * min(rsqrt(sum a^2), 1/eps)   (rsqrt -> EUP)
        ss = jnp.sum(a * a, axis=-1, keepdims=True)
        return a * jnp.minimum(lax.rsqrt(ss), 1e12)

    outs = []
    for h in range(num_heads):                 # static, small head count
        lo = h * head_dim
        q = qkv[:, lo:lo + head_dim].reshape(tb, n, head_dim)
        k = qkv[:, C + lo:C + lo + head_dim].reshape(tb, n, head_dim)
        v = qkv[:, 2 * C + lo:2 * C + lo + head_dim].reshape(tb, n, head_dim)

        # Cosine-sim attention: fold the per-head logit scale into q (cheaper
        # than scaling the (N, N) score matrix).
        qn = l2_normalize(q) * scale_ref[h]
        kn = l2_normalize(k)

        attn = jnp.einsum("bnd,bmd->bnm",
                          qn.astype(jnp.bfloat16), kn.astype(jnp.bfloat16),
                          preferred_element_type=jnp.float32)   # (TB, N, N) f32
        attn = attn + bias_ref[h][None, :, :]                   # rel-pos bias

        # softmax over last axis (f32; exp on EUP, approx reciprocal on EUP)
        attn = attn - jnp.max(attn, axis=-1, keepdims=True)
        p = jnp.exp(attn)
        p = p * pl.reciprocal(jnp.sum(p, axis=-1, keepdims=True), approx=True)

        outs.append(jnp.einsum("bnm,bmd->bnd",
                               p.astype(jnp.bfloat16), v.astype(jnp.bfloat16),
                               preferred_element_type=jnp.float32))  # (TB,N,hd)

    # (attn @ v).transpose(1,2).reshape(N, C): head h occupies cols [h*hd,(h+1)*hd)
    o_ref[...] = jnp.concatenate(outs, axis=-1).astype(o_ref.dtype)


# ----------------------------------------------------------------------------
# Parameter setup / relative position bias (plain JAX glue)
# ----------------------------------------------------------------------------
def _make_relative_tables(ws):
    """Replicates PosEmbMLPSwinv2D buffer construction (numpy, static)."""
    rch = np.arange(-(ws - 1), ws, dtype=np.float64)
    rcw = np.arange(-(ws - 1), ws, dtype=np.float64)
    table = np.stack(np.meshgrid(rch, rcw, indexing="ij"))          # (2, 2ws-1, 2ws-1)
    table = table.transpose(1, 2, 0).copy()                          # (2ws-1, 2ws-1, 2)
    table[..., 0] /= (ws - 1)
    table[..., 1] /= (ws - 1)
    table *= 8.0
    table = np.sign(table) * np.log2(np.abs(table) + 1.0) / np.log2(8.0)
    table = table.astype(np.float32)

    coords = np.stack(np.meshgrid(np.arange(ws), np.arange(ws), indexing="ij"))
    coords_flatten = coords.reshape(2, -1)
    rel = coords_flatten[:, :, None] - coords_flatten[:, None, :]    # (2, N, N)
    rel = rel.transpose(1, 2, 0).copy()                              # (N, N, 2)
    rel[..., 0] += ws - 1
    rel[..., 1] += ws - 1
    rel[..., 0] *= 2 * ws - 1
    rel_index = rel.sum(-1).astype(np.int32)                         # (N, N)
    return table, rel_index


def _relative_position_bias(params, ws, num_heads):
    """cpb_mlp -> gather -> 16*sigmoid, returns (H, N, N) float32."""
    table_np, rel_index_np = _make_relative_tables(ws)
    N = ws * ws
    t = jnp.asarray(table_np).reshape(-1, 2)                         # ((2ws-1)^2, 2)
    h1 = jnp.maximum(t @ params["cpb_w1"] + params["cpb_b1"], 0.0)   # ReLU
    bias_table = h1 @ params["cpb_w2"]                               # (-1, H)
    rel_index = jnp.asarray(rel_index_np).reshape(-1)
    bias = bias_table[rel_index].reshape(N, N, num_heads)
    bias = jnp.transpose(bias, (2, 0, 1))                            # (H, N, N)
    bias = 16.0 * jax.nn.sigmoid(bias)
    # n_global_feature = N - ws*ws = 0  => no padding needed.
    return bias.astype(jnp.float32)


def init_params(key, dim, num_heads):
    k1, k2, k3, _ = jax.random.split(key, 4)
    return {
        # nn.Linear(dim, 3*dim, bias=False); stored pre-transposed: (dim, 3*dim)
        "w_qkv_t": (jax.random.normal(k1, (dim, 3 * dim), jnp.float32) * 0.02),
        # cpb_mlp: Linear(2, 512, bias=True) -> ReLU -> Linear(512, H, bias=False)
        "cpb_w1": (jax.random.normal(k2, (2, 512), jnp.float32) * 0.02),
        "cpb_b1": jnp.zeros((512,), jnp.float32),
        "cpb_w2": (jax.random.normal(k3, (512, num_heads), jnp.float32) * 0.02),
        # logit_scale = log(10 * ones((H,1,1)))
        "logit_scale": jnp.log(10.0 * jnp.ones((num_heads, 1, 1), jnp.float32)),
    }


# ----------------------------------------------------------------------------
# Tile-size selection: batch as many windows per grid step as is reasonable
# while keeping >= 2 grid steps (both v7x TensorCores busy) and a sane block.
# ----------------------------------------------------------------------------
def _pick_tb(bd, n_tok, c, itemsize, max_tb=16, max_block_bytes=4 << 20):
    best = 1
    for tb in range(1, min(bd, max_tb) + 1):
        if bd % tb:
            continue
        if tb * n_tok * c * itemsize > max_block_bytes:
            break
        if bd // tb >= 2:
            best = tb
    return best


# ----------------------------------------------------------------------------
# Wrapper
# ----------------------------------------------------------------------------
def window_attention_2d_time(x, params, *, num_heads, resolution,
                             max_windows_per_step=16):
    B, Dt, N, C = x.shape
    assert N == resolution * resolution
    assert C % num_heads == 0
    head_dim = C // num_heads
    BD = B * Dt

    bias = _relative_position_bias(params, resolution, num_heads)     # (H, N, N)
    scale = jnp.exp(jnp.minimum(params["logit_scale"].reshape(-1), 4.6052))  # (H,)

    itemsize = jnp.dtype(x.dtype).itemsize
    tb = _pick_tb(BD, N, C, itemsize, max_tb=max_windows_per_step)
    grid = (BD // tb,)

    xr = x.reshape(BD, N, C)                          # native dtype, no upcast
    w_bf16 = params["w_qkv_t"].astype(jnp.bfloat16)   # halve the weight DMA

    kernel = functools.partial(_window_attn_kernel, num_heads=num_heads,
                               head_dim=head_dim, tb=tb, n_tok=N)

    # Crude VMEM budget: double-buffered x/out blocks + resident W/bias +
    # in-kernel f32 intermediates, clamped so it is safe on v7x's 64 MiB VMEM.
    block_bytes = tb * N * C * itemsize * 2                   # x tile + out tile
    resident_bytes = (C * 3 * C) * 2 + num_heads * N * N * 4  # bf16 W + f32 bias
    scratch_bytes = tb * N * (3 * C + 4 * N) * 4              # qkv + score temps
    vmem_limit = int(min(max(4 * block_bytes + resident_bytes + scratch_bytes
                             + (4 << 20), 16 << 20), 48 << 20))

    out = pl.pallas_call(
        kernel,
        out_shape=jax.ShapeDtypeStruct((BD, N, C), x.dtype),
        grid=grid,
        in_specs=[
            pl.BlockSpec(memory_space=pltpu.MemorySpace.SMEM),          # scale (H,)
            pl.BlockSpec((tb, N, C), lambda b: (b, 0, 0)),              # x tile
            # Constant index maps -> W and bias stay VMEM-resident across steps.
            pl.BlockSpec((C, 3 * C), lambda b: (0, 0)),                 # W_qkv^T (bf16)
            pl.BlockSpec((num_heads, N, N), lambda b: (0, 0, 0)),       # rel-pos bias
        ],
        out_specs=pl.BlockSpec((tb, N, C), lambda b: (b, 0, 0)),
        compiler_params=pltpu.CompilerParams(
            dimension_semantics=("parallel",),
            vmem_limit_bytes=vmem_limit),
    )(scale, xr, w_bf16, bias)

    return out.reshape(B, Dt, N, C)


# ----------------------------------------------------------------------------
# Pure-JAX reference (mirrors the PyTorch forward; matmul inputs cast to bf16
# to mirror the kernel's MXU precision, accumulation in f32).
# ----------------------------------------------------------------------------
def _reference(x, params, *, num_heads, resolution):
    B, Dt, N, C = x.shape
    hd = C // num_heads
    BD = B * Dt
    xr = x.reshape(BD, N, C)
    qkv = jnp.dot(xr.astype(jnp.bfloat16),
                  params["w_qkv_t"].astype(jnp.bfloat16),
                  preferred_element_type=jnp.float32)                 # (BD, N, 3C)
    qkv = qkv.reshape(BD, N, 3, num_heads, hd).transpose(2, 0, 3, 1, 4)
    q, k, v = qkv[0], qkv[1], qkv[2]                                   # (BD, H, N, hd)

    def l2n(a):
        return a / jnp.maximum(jnp.linalg.norm(a, axis=-1, keepdims=True), 1e-12)

    scale = jnp.exp(jnp.minimum(params["logit_scale"], 4.6052))        # (H,1,1)
    qn = l2n(q) * scale[None]
    kn = l2n(k)
    attn = jnp.einsum("bhnd,bhmd->bhnm",
                      qn.astype(jnp.bfloat16), kn.astype(jnp.bfloat16),
                      preferred_element_type=jnp.float32)
    bias = _relative_position_bias(params, resolution, num_heads)      # (H, N, N)
    attn = attn + bias[None]
    attn = jax.nn.softmax(attn, axis=-1)
    out = jnp.einsum("bhnm,bhmd->bhnd",
                     attn.astype(jnp.bfloat16), v.astype(jnp.bfloat16),
                     preferred_element_type=jnp.float32)
    out = out.transpose(0, 2, 1, 3).reshape(BD, N, C)
    return out.reshape(B, Dt, N, C).astype(x.dtype)


if __name__ == "__main__":
    # Small shapes consistent with the module: resolution=4 -> N=16 window tokens
    B, Dt = 2, 2
    resolution = 4
    N = resolution * resolution
    dim = 32
    num_heads = 4

    key = jax.random.PRNGKey(0)
    kx, kp = jax.random.split(key)
    x = jax.random.normal(kx, (B, Dt, N, dim), jnp.float32)
    params = init_params(kp, dim, num_heads)

    out = window_attention_2d_time(x, params, num_heads=num_heads,
                                   resolution=resolution)
    out = jax.block_until_ready(out)

    ref = _reference(x, params, num_heads=num_heads, resolution=resolution)
    assert out.shape == (B, Dt, N, dim)
    np.testing.assert_allclose(np.asarray(out), np.asarray(ref),
                               rtol=1e-2, atol=1e-2)

    print("KERNEL_OK")
</pallas_src>

<mosaic_0001>
module attributes {stable_mosaic.version = 11 : i64} {
  func.func @_window_attn_kernel(%arg0: i32, %arg1: memref<4xf32, #tpu.memory_space<smem>>, %arg2: memref<2x16x32xf32, #tpu.memory_space<vmem>>, %arg3: memref<32x96xbf16, #tpu.memory_space<vmem>>, %arg4: memref<4x16x16xf32, #tpu.memory_space<vmem>>, %arg5: memref<2x16x32xf32, #tpu.memory_space<vmem>>) attributes {dimension_semantics = [#tpu.dimension_semantics<parallel>], iteration_bounds = array<i64: 2>, scalar_prefetch = 0 : i64, scratch_operands = 0 : i64, tpu.core_type = #tpu.core_type<tc>, window_params = [{transform_indices = @transform_0, window_bounds = array<i64: 4>}, {transform_indices = @transform_1, window_bounds = array<i64: 2, 16, 32>}, {pipeline_mode = #tpu.pipeline_mode<synchronous>, transform_indices = @transform_2, window_bounds = array<i64: 32, 96>}, {pipeline_mode = #tpu.pipeline_mode<synchronous>, transform_indices = @transform_3, window_bounds = array<i64: 4, 16, 16>}, {transform_indices = @transform_4, window_bounds = array<i64: 2, 16, 32>}]} {
    %c0 = arith.constant 0 : index
    %c0_0 = arith.constant 0 : index
    %c0_1 = arith.constant 0 : index
    %0 = vector.load %arg2[%c0, %c0_0, %c0_1] : memref<2x16x32xf32, #tpu.memory_space<vmem>>, vector<2x16x32xf32>
    %1 = vector.shape_cast %0 : vector<2x16x32xf32> to vector<32x32xf32>
    %2 = arith.truncf %1 : vector<32x32xf32> to vector<32x32xbf16>
    %c0_2 = arith.constant 0 : index
    %c0_3 = arith.constant 0 : index
    %3 = vector.load %arg3[%c0_2, %c0_3] : memref<32x96xbf16, #tpu.memory_space<vmem>>, vector<32x96xbf16>
    %cst = arith.constant dense<0.000000e+00> : vector<32x96xf32>
    %4 = tpu.matmul %2, %3, %cst {dimension_numbers = #tpu.dot_dimension_numbers<[1], [0], [0], [1], [0, 0, 1, 1], [], []>} : vector<32x32xbf16>, vector<32x96xbf16>, vector<32x96xf32> -> vector<32x96xf32>
    %5 = vector.extract_strided_slice %4 {offsets = [0, 0], sizes = [32, 8], strides = [1, 1]} : vector<32x96xf32> to vector<32x8xf32>
    %6 = vector.shape_cast %5 : vector<32x8xf32> to vector<2x16x8xf32>
    %7 = vector.extract_strided_slice %4 {offsets = [0, 32], sizes = [32, 8], strides = [1, 1]} : vector<32x96xf32> to vector<32x8xf32>
    %8 = vector.shape_cast %7 : vector<32x8xf32> to vector<2x16x8xf32>
    %9 = vector.extract_strided_slice %4 {offsets = [0, 64], sizes = [32, 8], strides = [1, 1]} : vector<32x96xf32> to vector<32x8xf32>
    %10 = vector.shape_cast %9 : vector<32x8xf32> to vector<2x16x8xf32>
    %11 = arith.mulf %6, %6 : vector<2x16x8xf32>
    %cst_4 = arith.constant dense<0.000000e+00> : vector<2x16xf32>
    %12 = vector.multi_reduction <add>, %11, %cst_4 [2] : vector<2x16x8xf32> to vector<2x16xf32>
    %13 = vector.shape_cast %12 : vector<2x16xf32> to vector<2x16x1xf32>
    %14 = math.rsqrt %13 : vector<2x16x1xf32>
    %cst_5 = arith.constant 9.99999995E+11 : f32
    %15 = vector.broadcast %cst_5 : f32 to vector<2x16x1xf32>
    %16 = arith.minimumf %14, %15 : vector<2x16x1xf32>
    %17 = vector.broadcast %16 : vector<2x16x1xf32> to vector<2x16x8xf32>
    %18 = arith.mulf %6, %17 : vector<2x16x8xf32>
    %c0_6 = arith.constant 0 : index
    %19 = memref.load %arg1[%c0_6] : memref<4xf32, #tpu.memory_space<smem>>
    %20 = vector.broadcast %19 : f32 to vector<2x16x8xf32>
    %21 = arith.mulf %18, %20 : vector<2x16x8xf32>
    %22 = arith.mulf %8, %8 : vector<2x16x8xf32>
    %cst_7 = arith.constant dense<0.000000e+00> : vector<2x16xf32>
    %23 = vector.multi_reduction <add>, %22, %cst_7 [2] : vector<2x16x8xf32> to vector<2x16xf32>
    %24 = vector.shape_cast %23 : vector<2x16xf32> to vector<2x16x1xf32>
    %25 = math.rsqrt %24 : vector<2x16x1xf32>
    %cst_8 = arith.constant 9.99999995E+11 : f32
    %26 = vector.broadcast %cst_8 : f32 to vector<2x16x1xf32>
    %27 = arith.minimumf %25, %26 : vector<2x16x1xf32>
    %28 = vector.broadcast %27 : vector<2x16x1xf32> to vector<2x16x8xf32>
    %29 = arith.mulf %8, %28 : vector<2x16x8xf32>
    %30 = arith.truncf %21 : vector<2x16x8xf32> to vector<2x16x8xbf16>
    %31 = arith.truncf %29 : vector<2x16x8xf32> to vector<2x16x8xbf16>
    "tpu.trace_start"() <{level = 10 : i32, message = "bnd,bmd->bnm"}> : () -> ()
    %cst_9 = arith.constant dense<0.000000e+00> : vector<2x16x16xf32>
    %32 = tpu.matmul %30, %31, %cst_9 {dimension_numbers = #tpu.dot_dimension_numbers<[2], [2], [1], [1], [0, 0, 0, 1, 1, 1], [0], [0]>} : vector<2x16x8xbf16>, vector<2x16x8xbf16>, vector<2x16x16xf32> -> vector<2x16x16xf32>
    "tpu.trace_stop"() : () -> ()
    %c0_10 = arith.constant 0 : index
    %c0_11 = arith.constant 0 : index
    %c0_12 = arith.constant 0 : index
    %33 = vector.load %arg4[%c0_10, %c0_11, %c0_12] : memref<4x16x16xf32, #tpu.memory_space<vmem>>, vector<1x16x16xf32>
    %34 = vector.shape_cast %33 : vector<1x16x16xf32> to vector<16x16xf32>
    %35 = vector.shape_cast %34 : vector<16x16xf32> to vector<1x16x16xf32>
    %36 = vector.broadcast %35 : vector<1x16x16xf32> to vector<2x16x16xf32>
    %37 = arith.addf %32, %36 : vector<2x16x16xf32>
    %cst_13 = arith.constant dense<0xFF800000> : vector<2x16xf32>
    %38 = vector.multi_reduction <maximumf>, %37, %cst_13 [2] : vector<2x16x16xf32> to vector<2x16xf32>
    %39 = vector.shape_cast %38 : vector<2x16xf32> to vector<2x16x1xf32>
    %40 = vector.broadcast %39 : vector<2x16x1xf32> to vector<2x16x16xf32>
    %41 = arith.subf %37, %40 : vector<2x16x16xf32>
    %42 = math.exp %41 : vector<2x16x16xf32>
    %cst_14 = arith.constant dense<0.000000e+00> : vector<2x16xf32>
    %43 = vector.multi_reduction <add>, %42, %cst_14 [2] : vector<2x16x16xf32> to vector<2x16xf32>
    %44 = vector.shape_cast %43 : vector<2x16xf32> to vector<2x16x1xf32>
    %45 = tpu.reciprocal %44 {approx = true} : vector<2x16x1xf32> -> vector<2x16x1xf32>
    %46 = vector.broadcast %45 : vector<2x16x1xf32> to vector<2x16x16xf32>
    %47 = arith.mulf %42, %46 : vector<2x16x16xf32>
    %48 = arith.truncf %47 : vector<2x16x16xf32> to vector<2x16x16xbf16>
    %49 = arith.truncf %10 : vector<2x16x8xf32> to vector<2x16x8xbf16>
    "tpu.trace_start"() <{level = 10 : i32, message = "bnm,bmd->bnd"}> : () -> ()
    %cst_15 = arith.constant dense<0.000000e+00> : vector<2x16x8xf32>
    %50 = tpu.matmul %48, %49, %cst_15 {dimension_numbers = #tpu.dot_dimension_numbers<[2], [1], [1], [2], [0, 0, 0, 1, 1, 2], [0], [0]>} : vector<2x16x16xbf16>, vector<2x16x8xbf16>, vector<2x16x8xf32> -> vector<2x16x8xf32>
    "tpu.trace_stop"() : () -> ()
    %51 = vector.extract_strided_slice %4 {offsets = [0, 8], sizes = [32, 8], strides = [1, 1]} : vector<32x96xf32> to vector<32x8xf32>
    %52 = vector.shape_cast %51 : vector<32x8xf32> to vector<2x16x8xf32>
    %53 = vector.extract_strided_slice %4 {offsets = [0, 40], sizes = [32, 8], strides = [1, 1]} : vector<32x96xf32> to vector<32x8xf32>
    %54 = vector.shape_cast %53 : vector<32x8xf32> to vector<2x16x8xf32>
    %55 = vector.extract_strided_slice %4 {offsets = [0, 72], sizes = [32, 8], strides = [1, 1]} : vector<32x96xf32> to vector<32x8xf32>
    %56 = vector.shape_cast %55 : vector<32x8xf32> to vector<2x16x8xf32>
    %57 = arith.mulf %52, %52 : vector<2x16x8xf32>
    %cst_16 = arith.constant dense<0.000000e+00> : vector<2x16xf32>
    %58 = vector.multi_reduction <add>, %57, %cst_16 [2] : vector<2x16x8xf32> to vector<2x16xf32>
    %59 = vector.shape_cast %58 : vector<2x16xf32> to vector<2x16x1xf32>
    %60 = math.rsqrt %59 : vector<2x16x1xf32>
    %cst_17 = arith.constant 9.99999995E+11 : f32
    %61 = vector.broadcast %cst_17 : f32 to vector<2x16x1xf32>
    %62 = arith.minimumf %60, %61 : vector<2x16x1xf32>
    %63 = vector.broadcast %62 : vector<2x16x1xf32> to vector<2x16x8xf32>
    %64 = arith.mulf %52, %63 : vector<2x16x8xf32>
    %c1 = arith.constant 1 : index
    %65 = memref.load %arg1[%c1] : memref<4xf32, #tpu.memory_space<smem>>
    %66 = vector.broadcast %65 : f32 to vector<2x16x8xf32>
    %67 = arith.mulf %64, %66 : vector<2x16x8xf32>
    %68 = arith.mulf %54, %54 : vector<2x16x8xf32>
    %cst_18 = arith.constant dense<0.000000e+00> : vector<2x16xf32>
    %69 = vector.multi_reduction <add>, %68, %cst_18 [2] : vector<2x16x8xf32> to vector<2x16xf32>
    %70 = vector.shape_cast %69 : vector<2x16xf32> to vector<2x16x1xf32>
    %71 = math.rsqrt %70 : vector<2x16x1xf32>
    %cst_19 = arith.constant 9.99999995E+11 : f32
    %72 = vector.broadcast %cst_19 : f32 to vector<2x16x1xf32>
    %73 = arith.minimumf %71, %72 : vector<2x16x1xf32>
    %74 = vector.broadcast %73 : vector<2x16x1xf32> to vector<2x16x8xf32>
    %75 = arith.mulf %54, %74 : vector<2x16x8xf32>
    %76 = arith.truncf %67 : vector<2x16x8xf32> to vector<2x16x8xbf16>
    %77 = arith.truncf %75 : vector<2x16x8xf32> to vector<2x16x8xbf16>
    "tpu.trace_start"() <{level = 10 : i32, message = "bnd,bmd->bnm"}> : () -> ()
    %cst_20 = arith.constant dense<0.000000e+00> : vector<2x16x16xf32>
    %78 = tpu.matmul %76, %77, %cst_20 {dimension_numbers = #tpu.dot_dimension_numbers<[2], [2], [1], [1], [0, 0, 0, 1, 1, 1], [0], [0]>} : vector<2x16x8xbf16>, vector<2x16x8xbf16>, vector<2x16x16xf32> -> vector<2x16x16xf32>
    "tpu.trace_stop"() : () -> ()
    %c1_21 = arith.constant 1 : index
    %c0_22 = arith.constant 0 : index
    %c0_23 = arith.constant 0 : index
    %79 = vector.load %arg4[%c1_21, %c0_22, %c0_23] : memref<4x16x16xf32, #tpu.memory_space<vmem>>, vector<1x16x16xf32>
    %80 = vector.shape_cast %79 : vector<1x16x16xf32> to vector<16x16xf32>
    %81 = vector.shape_cast %80 : vector<16x16xf32> to vector<1x16x16xf32>
    %82 = vector.broadcast %81 : vector<1x16x16xf32> to vector<2x16x16xf32>
    %83 = arith.addf %78, %82 : vector<2x16x16xf32>
    %cst_24 = arith.constant dense<0xFF800000> : vector<2x16xf32>
    %84 = vector.multi_reduction <maximumf>, %83, %cst_24 [2] : vector<2x16x16xf32> to vector<2x16xf32>
    %85 = vector.shape_cast %84 : vector<2x16xf32> to vector<2x16x1xf32>
    %86 = vector.broadcast %85 : vector<2x16x1xf32> to vector<2x16x16xf32>
    %87 = arith.subf %83, %86 : vector<2x16x16xf32>
    %88 = math.exp %87 : vector<2x16x16xf32>
    %cst_25 = arith.constant dense<0.000000e+00> : vector<2x16xf32>
    %89 = vector.multi_reduction <add>, %88, %cst_25 [2] : vector<2x16x16xf32> to vector<2x16xf32>
    %90 = vector.shape_cast %89 : vector<2x16xf32> to vector<2x16x1xf32>
    %91 = tpu.reciprocal %90 {approx = true} : vector<2x16x1xf32> -> vector<2x16x1xf32>
    %92 = vector.broadcast %91 : vector<2x16x1xf32> to vector<2x16x16xf32>
    %93 = arith.mulf %88, %92 : vector<2x16x16xf32>
    %94 = arith.truncf %93 : vector<2x16x16xf32> to vector<2x16x16xbf16>
    %95 = arith.truncf %56 : vector<2x16x8xf32> to vector<2x16x8xbf16>
    "tpu.trace_start"() <{level = 10 : i32, message = "bnm,bmd->bnd"}> : () -> ()
    %cst_26 = arith.constant dense<0.000000e+00> : vector<2x16x8xf32>
    %96 = tpu.matmul %94, %95, %cst_26 {dimension_numbers = #tpu.dot_dimension_numbers<[2], [1], [1], [2], [0, 0, 0, 1, 1, 2], [0], [0]>} : vector<2x16x16xbf16>, vector<2x16x8xbf16>, vector<2x16x8xf32> -> vector<2x16x8xf32>
    "tpu.trace_stop"() : () -> ()
    %97 = vector.extract_strided_slice %4 {offsets = [0, 16], sizes = [32, 8], strides = [1, 1]} : vector<32x96xf32> to vector<32x8xf32>
    %98 = vector.shape_cast %97 : vector<32x8xf32> to vector<2x16x8xf32>
    %99 = vector.extract_strided_slice %4 {offsets = [0, 48], sizes = [32, 8], strides = [1, 1]} : vector<32x96xf32> to vector<32x8xf32>
    %100 = vector.shape_cast %99 : vector<32x8xf32> to vector<2x16x8xf32>
    %101 = vector.extract_strided_slice %4 {offsets = [0, 80], sizes = [32, 8], strides = [1, 1]} : vector<32x96xf32> to vector<32x8xf32>
    %102 = vector.shape_cast %101 : vector<32x8xf32> to vector<2x16x8xf32>
    %103 = arith.mulf %98, %98 : vector<2x16x8xf32>
    %cst_27 = arith.constant dense<0.000000e+00> : vector<2x16xf32>
    %104 = vector.multi_reduction <add>, %103, %cst_27 [2] : vector<2x16x8xf32> to vector<2x16xf32>
    %105 = vector.shape_cast %104 : vector<2x16xf32> to vector<2x16x1xf32>
    %106 = math.rsqrt %105 : vector<2x16x1xf32>
    %cst_28 = arith.constant 9.99999995E+11 : f32
    %107 = vector.broadcast %cst_28 : f32 to vector<2x16x1xf32>
    %108 = arith.minimumf %106, %107 : vector<2x16x1xf32>
    %109 = vector.broadcast %108 : vector<2x16x1xf32> to vector<2x16x8xf32>
    %110 = arith.mulf %98, %109 : vector<2x16x8xf32>
    %c2 = arith.constant 2 : index
    %111 = memref.load %arg1[%c2] : memref<4xf32, #tpu.memory_space<smem>>
    %112 = vector.broadcast %111 : f32 to vector<2x16x8xf32>
    %113 = arith.mulf %110, %112 : vector<2x16x8xf32>
    %114 = arith.mulf %100, %100 : vector<2x16x8xf32>
    %cst_29 = arith.constant dense<0.000000e+00> : vector<2x16xf32>
    %115 = vector.multi_reduction <add>, %114, %cst_29 [2] : vector<2x16x8xf32> to vector<2x16xf32>
    %116 = vector.shape_cast %115 : vector<2x16xf32> to vector<2x16x1xf32>
    %117 = math.rsqrt %116 : vector<2x16x1xf32>
    %cst_30 = arith.constant 9.99999995E+11 : f32
    %118 = vector.broadcast %cst_30 : f32 to vector<2x16x1xf32>
    %119 = arith.minimumf %117, %118 : vector<2x16x1xf32>
    %120 = vector.broadcast %119 : vector<2x16x1xf32> to vector<2x16x8xf32>
    %121 = arith.mulf %100, %120 : vector<2x16x8xf32>
    %122 = arith.truncf %113 : vector<2x16x8xf32> to vector<2x16x8xbf16>
    %123 = arith.truncf %121 : vector<2x16x8xf32> to vector<2x16x8xbf16>
    "tpu.trace_start"() <{level = 10 : i32, message = "bnd,bmd->bnm"}> : () -> ()
    %cst_31 = arith.constant dense<0.000000e+00> : vector<2x16x16xf32>
    %124 = tpu.matmul %122, %123, %cst_31 {dimension_numbers = #tpu.dot_dimension_numbers<[2], [2], [1], [1], [0, 0, 0, 1, 1, 1], [0], [0]>} : vector<2x16x8xbf16>, vector<2x16x8xbf16>, vector<2x16x16xf32> -> vector<2x16x16xf32>
    "tpu.trace_stop"() : () -> ()
    %c2_32 = arith.constant 2 : index
    %c0_33 = arith.constant 0 : index
    %c0_34 = arith.constant 0 : index
    %125 = vector.load %arg4[%c2_32, %c0_33, %c0_34] : memref<4x16x16xf32, #tpu.memory_space<vmem>>, vector<1x16x16xf32>
    %126 = vector.shape_cast %125 : vector<1x16x16xf32> to vector<16x16xf32>
    %127 = vector.shape_cast %126 : vector<16x16xf32> to vector<1x16x16xf32>
    %128 = vector.broadcast %127 : vector<1x16x16xf32> to vector<2x16x16xf32>
    %129 = arith.addf %124, %128 : vector<2x16x16xf32>
    %cst_35 = arith.constant dense<0xFF800000> : vector<2x16xf32>
    %130 = vector.multi_reduction <maximumf>, %129, %cst_35 [2] : vector<2x16x16xf32> to vector<2x16xf32>
    %131 = vector.shape_cast %130 : vector<2x16xf32> to vector<2x16x1xf32>
    %132 = vector.broadcast %131 : vector<2x16x1xf32> to vector<2x16x16xf32>
    %133 = arith.subf %129, %132 : vector<2x16x16xf32>
    %134 = math.exp %133 : vector<2x16x16xf32>
    %cst_36 = arith.constant dense<0.000000e+00> : vector<2x16xf32>
    %135 = vector.multi_reduction <add>, %134, %cst_36 [2] : vector<2x16x16xf32> to vector<2x16xf32>
    %136 = vector.shape_cast %135 : vector<2x16xf32> to vector<2x16x1xf32>
    %137 = tpu.reciprocal %136 {approx = true} : vector<2x16x1xf32> -> vector<2x16x1xf32>
    %138 = vector.broadcast %137 : vector<2x16x1xf32> to vector<2x16x16xf32>
    %139 = arith.mulf %134, %138 : vector<2x16x16xf32>
    %140 = arith.truncf %139 : vector<2x16x16xf32> to vector<2x16x16xbf16>
    %141 = arith.truncf %102 : vector<2x16x8xf32> to vector<2x16x8xbf16>
    "tpu.trace_start"() <{level = 10 : i32, message = "bnm,bmd->bnd"}> : () -> ()
    %cst_37 = arith.constant dense<0.000000e+00> : vector<2x16x8xf32>
    %142 = tpu.matmul %140, %141, %cst_37 {dimension_numbers = #tpu.dot_dimension_numbers<[2], [1], [1], [2], [0, 0, 0, 1, 1, 2], [0], [0]>} : vector<2x16x16xbf16>, vector<2x16x8xbf16>, vector<2x16x8xf32> -> vector<2x16x8xf32>
    "tpu.trace_stop"() : () -> ()
    %143 = vector.extract_strided_slice %4 {offsets = [0, 24], sizes = [32, 8], strides = [1, 1]} : vector<32x96xf32> to vector<32x8xf32>
    %144 = vector.shape_cast %143 : vector<32x8xf32> to vector<2x16x8xf32>
    %145 = vector.extract_strided_slice %4 {offsets = [0, 56], sizes = [32, 8], strides = [1, 1]} : vector<32x96xf32> to vector<32x8xf32>
    %146 = vector.shape_cast %145 : vector<32x8xf32> to vector<2x16x8xf32>
    %147 = vector.extract_strided_slice %4 {offsets = [0, 88], sizes = [32, 8], strides = [1, 1]} : vector<32x96xf32> to vector<32x8xf32>
    %148 = vector.shape_cast %147 : vector<32x8xf32> to vector<2x16x8xf32>
    %149 = arith.mulf %144, %144 : vector<2x16x8xf32>
    %cst_38 = arith.constant dense<0.000000e+00> : vector<2x16xf32>
    %150 = vector.multi_reduction <add>, %149, %cst_38 [2] : vector<2x16x8xf32> to vector<2x16xf32>
    %151 = vector.shape_cast %150 : vector<2x16xf32> to vector<2x16x1xf32>
    %152 = math.rsqrt %151 : vector<2x16x1xf32>
    %cst_39 = arith.constant 9.99999995E+11 : f32
    %153 = vector.broadcast %cst_39 : f32 to vector<2x16x1xf32>
    %154 = arith.minimumf %152, %153 : vector<2x16x1xf32>
    %155 = vector.broadcast %154 : vector<2x16x1xf32> to vector<2x16x8xf32>
    %156 = arith.mulf %144, %155 : vector<2x16x8xf32>
    %c3 = arith.constant 3 : index
    %157 = memref.load %arg1[%c3] : memref<4xf32, #tpu.memory_space<smem>>
    %158 = vector.broadcast %157 : f32 to vector<2x16x8xf32>
    %159 = arith.mulf %156, %158 : vector<2x16x8xf32>
    %160 = arith.mulf %146, %146 : vector<2x16x8xf32>
    %cst_40 = arith.constant dense<0.000000e+00> : vector<2x16xf32>
    %161 = vector.multi_reduction <add>, %160, %cst_40 [2] : vector<2x16x8xf32> to vector<2x16xf32>
    %162 = vector.shape_cast %161 : vector<2x16xf32> to vector<2x16x1xf32>
    %163 = math.rsqrt %162 : vector<2x16x1xf32>
    %cst_41 = arith.constant 9.99999995E+11 : f32
    %164 = vector.broadcast %cst_41 : f32 to vector<2x16x1xf32>
    %165 = arith.minimumf %163, %164 : vector<2x16x1xf32>
    %166 = vector.broadcast %165 : vector<2x16x1xf32> to vector<2x16x8xf32>
    %167 = arith.mulf %146, %166 : vector<2x16x8xf32>
    %168 = arith.truncf %159 : vector<2x16x8xf32> to vector<2x16x8xbf16>
    %169 = arith.truncf %167 : vector<2x16x8xf32> to vector<2x16x8xbf16>
    "tpu.trace_start"() <{level = 10 : i32, message = "bnd,bmd->bnm"}> : () -> ()
    %cst_42 = arith.constant dense<0.000000e+00> : vector<2x16x16xf32>
    %170 = tpu.matmul %168, %169, %cst_42 {dimension_numbers = #tpu.dot_dimension_numbers<[2], [2], [1], [1], [0, 0, 0, 1, 1, 1], [0], [0]>} : vector<2x16x8xbf16>, vector<2x16x8xbf16>, vector<2x16x16xf32> -> vector<2x16x16xf32>
    "tpu.trace_stop"() : () -> ()
    %c3_43 = arith.constant 3 : index
    %c0_44 = arith.constant 0 : index
    %c0_45 = arith.constant 0 : index
    %171 = vector.load %arg4[%c3_43, %c0_44, %c0_45] : memref<4x16x16xf32, #tpu.memory_space<vmem>>, vector<1x16x16xf32>
    %172 = vector.shape_cast %171 : vector<1x16x16xf32> to vector<16x16xf32>
    %173 = vector.shape_cast %172 : vector<16x16xf32> to vector<1x16x16xf32>
    %174 = vector.broadcast %173 : vector<1x16x16xf32> to vector<2x16x16xf32>
    %175 = arith.addf %170, %174 : vector<2x16x16xf32>
    %cst_46 = arith.constant dense<0xFF800000> : vector<2x16xf32>
    %176 = vector.multi_reduction <maximumf>, %175, %cst_46 [2] : vector<2x16x16xf32> to vector<2x16xf32>
    %177 = vector.shape_cast %176 : vector<2x16xf32> to vector<2x16x1xf32>
    %178 = vector.broadcast %177 : vector<2x16x1xf32> to vector<2x16x16xf32>
    %179 = arith.subf %175, %178 : vector<2x16x16xf32>
    %180 = math.exp %179 : vector<2x16x16xf32>
    %cst_47 = arith.constant dense<0.000000e+00> : vector<2x16xf32>
    %181 = vector.multi_reduction <add>, %180, %cst_47 [2] : vector<2x16x16xf32> to vector<2x16xf32>
    %182 = vector.shape_cast %181 : vector<2x16xf32> to vector<2x16x1xf32>
    %183 = tpu.reciprocal %182 {approx = true} : vector<2x16x1xf32> -> vector<2x16x1xf32>
    %184 = vector.broadcast %183 : vector<2x16x1xf32> to vector<2x16x16xf32>
    %185 = arith.mulf %180, %184 : vector<2x16x16xf32>
    %186 = arith.truncf %185 : vector<2x16x16xf32> to vector<2x16x16xbf16>
    %187 = arith.truncf %148 : vector<2x16x8xf32> to vector<2x16x8xbf16>
    "tpu.trace_start"() <{level = 10 : i32, message = "bnm,bmd->bnd"}> : () -> ()
    %cst_48 = arith.constant dense<0.000000e+00> : vector<2x16x8xf32>
    %188 = tpu.matmul %186, %187, %cst_48 {dimension_numbers = #tpu.dot_dimension_numbers<[2], [1], [1], [2], [0, 0, 0, 1, 1, 2], [0], [0]>} : vector<2x16x16xbf16>, vector<2x16x8xbf16>, vector<2x16x8xf32> -> vector<2x16x8xf32>
    "tpu.trace_stop"() : () -> ()
    %189 = tpu.concatenate %50, %96, %142, %188 in 2 : vector<2x16x8xf32>, vector<2x16x8xf32>, vector<2x16x8xf32>, vector<2x16x8xf32> -> vector<2x16x32xf32>
    %c0_49 = arith.constant 0 : index
    %c0_50 = arith.constant 0 : index
    %c0_51 = arith.constant 0 : index
    %190 = vector.load %arg5[%c0_49, %c0_50, %c0_51] : memref<2x16x32xf32, #tpu.memory_space<vmem>>, vector<2x16x32xf32>
    tpu.vector_store %arg5[%c0_49, %c0_50, %c0_51], %189 {strides = array<i32>} : memref<2x16x32xf32, #tpu.memory_space<vmem>>, vector<2x16x32xf32>,
    return
  }
  func.func @transform_0(%arg0: i32) -> i32 {
    %c0_i32 = arith.constant 0 : i32
    %c0_i32_0 = arith.constant 0 : i32
    return %c0_i32 : i32
  }
  func.func @transform_1(%arg0: i32) -> (i32, i32, i32) {
    %c0_i32 = arith.constant 0 : i32
    %c0_i32_0 = arith.constant 0 : i32
    %c0_i32_1 = arith.constant 0 : i32
    return %arg0, %c0_i32, %c0_i32_0 : i32, i32, i32
  }
  func.func @transform_2(%arg0: i32) -> (i32, i32) {
    %c0_i32 = arith.constant 0 : i32
    %c0_i32_0 = arith.constant 0 : i32
    %c0_i32_1 = arith.constant 0 : i32
    return %c0_i32, %c0_i32_0 : i32, i32
  }
  func.func @transform_3(%arg0: i32) -> (i32, i32, i32) {
    %c0_i32 = arith.constant 0 : i32
    %c0_i32_0 = arith.constant 0 : i32
    %c0_i32_1 = arith.constant 0 : i32
    %c0_i32_2 = arith.constant 0 : i32
    return %c0_i32, %c0_i32_0, %c0_i32_1 : i32, i32, i32
  }
  func.func @transform_4(%arg0: i32) -> (i32, i32, i32) {
    %c0_i32 = arith.constant 0 : i32
    %c0_i32_0 = arith.constant 0 : i32
    %c0_i32_1 = arith.constant 0 : i32
    return %arg0, %c0_i32, %c0_i32_0 : i32, i32, i32
  }
}

</mosaic_0001>

<llo_original>
// kernel: tpu_custom_call.1
$region0: #{tpu_custom_call.1}
  #allocation0 [shape = 'u32[]', space=smem, size = 0x4, offset = 0x4, fixed_abs, tag = 'smem constant byte address 0x4 - core index']
  #allocation1 [shape = 'u32[144,128]{1,0:T(1,128)}', space=vmem, size = 0x12000, scoped, tag = 'internal scratch']
  %s0 = inlined_call_operand.hbm [shape: f32[4], index: 0, kind: input, shape index: {}]
  %s1 = inlined_call_operand.hbm [shape: f32[4,16,32], index: 1, kind: input, shape index: {}]
  %s2 = inlined_call_operand.hbm [shape: bf16[32,96], index: 2, kind: input, shape index: {}]
  %s3 = inlined_call_operand.hbm [shape: f32[4,16,16], index: 3, kind: input, shape index: {}]
  %s4 = inlined_call_operand.hbm [shape: f32[4,16,32], index: 4, kind: output, shape index: {}]
  %s5 = sld [smem:[#allocation0]]
  $region65: #{tpu_custom_call.1} parent=0
    _
  %s7 = ssub.s32 1, %s5
  %s8 = scalar_select 0, %s7, %s5
  $region1: #{tpu_custom_call.1} parent=0
    #allocation2 [shape = 'u8[512]{0}', space=smem, size = 0x200, scoped, tag = 'input window, operand 0, single buffered']
    #allocation3 [shape = 's32[2]{0}', space=sflag, size = 0x8, scoped, tag = 'scoped memory for tpu_custom_call.1']
    #allocation4 [shape = 's32[2]{0}', space=sflag, size = 0x8, scoped, tag = 'scoped memory for tpu_custom_call.1']
    #allocation5 [shape = 's32[2]{0}', space=sflag, size = 0x8, scoped, tag = 'scoped memory for tpu_custom_call.1']
    #allocation6 [shape = 'u8[32768]{0}', space=vmem, size = 0x8000, scoped, tag = 'input window, operand 1']
    #allocation7 [shape = 'u8[8192]{0}', space=vmem, size = 0x2000, scoped, tag = 'input window, operand 2, single buffered']
    #allocation8 [shape = 's32[1]{0}', space=sflag, size = 0x4, scoped, tag = 'scoped memory for tpu_custom_call.1']
    #allocation9 [shape = 'u8[32768]{0}', space=vmem, size = 0x8000, scoped, tag = 'input window, operand 3, single buffered']
    #allocation10 [shape = 'u8[32768]{0}', space=vmem, size = 0x8000, scoped, tag = 'output window, operand 0']
    %9 = vsyncpa [#allocation5], 0
    %10 = vsyncpa [#allocation3], 0
    %s11 = scalar_lea.sflag [#allocation3], 1
    %12 = vsyncpa %s11, 0
    %13 = vsyncpa [#allocation8], 0
    %14 = vsyncpa [#allocation4], 0
    %s15 = scalar_lea.sflag [#allocation4], 1
    %16 = vsyncpa %s15, 0
    loop: start=0, step=1, limit=4
    $region2: #{tpu_custom_call.1} parent=1 // loop_pre_header
      _
    $region3: #{tpu_custom_call.1} parent=1 // loop_header
      %s18 = sphi 0, %s22
      %p19 = scmp.ge.s32.totalorder %s18, 4
      %s26 = sphi 0, %s26
      %s28 = sphi 0, %s26
      %s29 = sphi 0, %s28
      %s43 = sphi 0, %s29
      %s49 = sphi 0, %s51
      %s52 = sphi 0, %s49
      %s53 = sphi 0, %s52
      %s69 = sphi 0, %s53
      %s73 = sphi 0, %s73
      %s75 = sphi 0, %s73
      %s76 = sphi 0, %s75
      %s90 = sphi 0, %s76
      %s94 = sphi 0, %s94
      %s96 = sphi 0, %s94
      %s97 = sphi 0, %s96
      %s111 = sphi 0, %s97
      %s117 = sphi 0, %s119
      %s120 = sphi 0, %s117
      %s121 = sphi 0, %s120
      %s137 = sphi 0, %s121
    $region4: #{tpu_custom_call.1} parent=1 // loop_header_branch
      %21 = sbr.rel (%p19) target = $region8
    $region5: #{tpu_custom_call.1} parent=1 // loop_body
      %s23 = ssub.s32 %s18, 1
      %s24 = ssub.s32 %s18, 2
      %s25 = sadd.s32 %s18, 1
      %s27 = sadd.s32 %s26, 1
      %p30 = scmp.eq.s32.totalorder %s18, 1
      %p31 = scmp.ne.s32.totalorder %s26, %s28
      %p32 = scmp.eq.s32.totalorder %s18, 0
      %p33 = por %p31, %p32
      %p34 = scmp.ne.s32.totalorder %s26, %s28
      %p35 = scmp.eq.s32.totalorder %s23, 1
      %p36 = por %p34, %p35
      %p37 = scmp.ne.s32.totalorder %s28, %s29
      %p38 = scmp.eq.s32.totalorder %s23, 0
      %p39 = por %p37, %p38
      %p40 = scmp.ne.s32.totalorder %s28, %s29
      %p41 = scmp.eq.s32.totalorder %s24, 1
      %p42 = por %p40, %p41
      %p44 = scmp.ne.s32.totalorder %s29, %s43
      %p45 = scmp.eq.s32.totalorder %s24, 0
      %p46 = por %p44, %p45
      %s47 = ssub.s32 %s18, %s25
      %p48 = scmp.eq.s32.totalorder %s47, 0
      %s50 = sadd.s32 %s49, 1
      %s51 = scalar_select %p48, %s49, %s50
      %p54 = pneg %p48
      %p55 = scmp.eq.s32.totalorder %s18, 1
      %p56 = por %p54, %p55
      %p57 = scmp.ne.s32.totalorder %s49, %s52
      %p58 = scmp.eq.s32.totalorder %s18, 0
      %p59 = por %p57, %p58
      %p60 = scmp.ne.s32.totalorder %s49, %s52
      %p61 = scmp.eq.s32.totalorder %s23, 1
      %p62 = por %p60, %p61
      %p63 = scmp.ne.s32.totalorder %s52, %s53
      %p64 = scmp.eq.s32.totalorder %s23, 0
      %p65 = por %p63, %p64
      %p66 = scmp.ne.s32.totalorder %s52, %s53
      %p67 = scmp.eq.s32.totalorder %s24, 1
      %p68 = por %p66, %p67
      %p70 = scmp.ne.s32.totalorder %s53, %s69
      %p71 = scmp.eq.s32.totalorder %s24, 0
      %p72 = por %p70, %p71
      %s74 = sadd.s32 %s73, 1
      %p77 = scmp.eq.s32.totalorder %s18, 1
      %p78 = scmp.ne.s32.totalorder %s73, %s75
      %p79 = scmp.eq.s32.totalorder %s18, 0
      %p80 = por %p78, %p79
      %p81 = scmp.ne.s32.totalorder %s73, %s75
      %p82 = scmp.eq.s32.totalorder %s23, 1
      %p83 = por %p81, %p82
      %p84 = scmp.ne.s32.totalorder %s75, %s76
      %p85 = scmp.eq.s32.totalorder %s23, 0
      %p86 = por %p84, %p85
      %p87 = scmp.ne.s32.totalorder %s75, %s76
      %p88 = scmp.eq.s32.totalorder %s24, 1
      %p89 = por %p87, %p88
      %p91 = scmp.ne.s32.totalorder %s76, %s90
      %p92 = scmp.eq.s32.totalorder %s24, 0
      %p93 = por %p91, %p92
      %s95 = sadd.s32 %s94, 1
      %p98 = scmp.eq.s32.totalorder %s18, 1
      %p99 = scmp.ne.s32.totalorder %s94, %s96
      %p100 = scmp.eq.s32.totalorder %s18, 0
      %p101 = por %p99, %p100
      %p102 = scmp.ne.s32.totalorder %s94, %s96
      %p103 = scmp.eq.s32.totalorder %s23, 1
      %p104 = por %p102, %p103
      %p105 = scmp.ne.s32.totalorder %s96, %s97
      %p106 = scmp.eq.s32.totalorder %s23, 0
      %p107 = por %p105, %p106
      %p108 = scmp.ne.s32.totalorder %s96, %s97
      %p109 = scmp.eq.s32.totalorder %s24, 1
      %p110 = por %p108, %p109
      %p112 = scmp.ne.s32.totalorder %s97, %s111
      %p113 = scmp.eq.s32.totalorder %s24, 0
      %p114 = por %p112, %p113
      %s115 = ssub.s32 %s18, %s25
      %p116 = scmp.eq.s32.totalorder %s115, 0
      %s118 = sadd.s32 %s117, 1
      %s119 = scalar_select %p116, %s117, %s118
      %p122 = pneg %p116
      %p123 = scmp.eq.s32.totalorder %s18, 1
      %p124 = por %p122, %p123
      %p125 = scmp.ne.s32.totalorder %s117, %s120
      %p126 = scmp.eq.s32.totalorder %s18, 0
      %p127 = por %p125, %p126
      %p128 = scmp.ne.s32.totalorder %s117, %s120
      %p129 = scmp.eq.s32.totalorder %s23, 1
      %p130 = por %p128, %p129
      %p131 = scmp.ne.s32.totalorder %s120, %s121
      %p132 = scmp.eq.s32.totalorder %s23, 0
      %p133 = por %p131, %p132
      %p134 = scmp.ne.s32.totalorder %s120, %s121
      %p135 = scmp.eq.s32.totalorder %s24, 1
      %p136 = por %p134, %p135
      %p138 = scmp.ne.s32.totalorder %s121, %s137
      %p139 = scmp.eq.s32.totalorder %s24, 0
      %p140 = por %p138, %p139
      %p141 = scmp.le.s32.totalorder 1, %s18
      %p142 = scmp.lt.s32.totalorder %s18, 3
      %p143 = pnand %p141, %p142
      %p144 = pneg %p143
      // Predicated region
      $region9: #{tpu_custom_call.1} parent=5 // pred_check
        _
      $region10: #{tpu_custom_call.1} parent=5 // pred_check_branch
        %146 = sbr.rel (%p143) target = $region12
      $region11: #{tpu_custom_call.1} parent=5 // pred_region
        %s147 = ssub.s32 %s18, 1
        // Predicated region
        $region13: #{tpu_custom_call.1} parent=11 // pred_check
          %p148 = pneg %p39
        $region14: #{tpu_custom_call.1} parent=11 // pred_check_branch
          %150 = sbr.rel (%p148) target = $region16
        $region15: #{tpu_custom_call.1} parent=11 // pred_region
          %s152 = ssub.s32 16, 16
          %153 = vsyncadd [#allocation5], %s152
          %156 = dma.hbm_to_smem %s0, 16, [#allocation2], [#allocation5]
        $region16: #{tpu_custom_call.1} parent=11 // pred_fallthru
          _
        // Predicated region
        $region17: #{tpu_custom_call.1} parent=11 // pred_check
          %p157 = pneg %p86
        $region18: #{tpu_custom_call.1} parent=11 // pred_check_branch
          %159 = sbr.rel (%p157) target = $region20
        $region19: #{tpu_custom_call.1} parent=11 // pred_region
          %s161 = ssub.s32 256, 256
          %162 = vsyncadd [#allocation8], %s161
          %s163 = sshll.u32 [#allocation7], 4
          %s164 = int_to_ptr.vmem [resolvable:$true] %s163
          %169 = dma.hbm_to_vmem [thread:$0]  %s2, 256, %s164, [#allocation8], 64, 64, 4
        $region20: #{tpu_custom_call.1} parent=11 // pred_fallthru
          _
        // Predicated region
        $region21: #{tpu_custom_call.1} parent=11 // pred_check
          %p170 = pneg %p107
        $region22: #{tpu_custom_call.1} parent=11 // pred_check_branch
          %172 = sbr.rel (%p170) target = $region24
        $region23: #{tpu_custom_call.1} parent=11 // pred_region
          %s174 = ssub.s32 1024, 1024
          %175 = vsyncadd [#allocation8], %s174
          %s176 = sshll.u32 [#allocation9], 4
          %s177 = int_to_ptr.vmem [resolvable:$true] %s176
          %182 = dma.hbm_to_vmem [thread:$0]  %s3, 1024, %s177, [#allocation8], 128, 128, 8
        $region24: #{tpu_custom_call.1} parent=11 // pred_fallthru
          _
      $region12: #{tpu_custom_call.1} parent=5 // pred_fallthru
        _
      %p183 = scmp.lt.s32.totalorder %s18, 2
      // Predicated region
      $region25: #{tpu_custom_call.1} parent=5 // pred_check
        %p184 = pneg %p183
      $region26: #{tpu_custom_call.1} parent=5 // pred_check_branch
        %186 = sbr.rel (%p184) target = $region28
      $region27: #{tpu_custom_call.1} parent=5 // pred_region
        // Predicated region
        $region29: #{tpu_custom_call.1} parent=27 // pred_check
          %p187 = pneg %p59
        $region30: #{tpu_custom_call.1} parent=27 // pred_check_branch
          %189 = sbr.rel (%p187) target = $region32
        $region31: #{tpu_custom_call.1} parent=27 // pred_region
          %s190 = sand.u32 %s49, 1
          %s191 = scalar_lea.sflag [#allocation3], %s190
          %s192 = sand.u32 %s49, 1
          %s193 = smul.addr %s192, 32
          %s194 = scalar_lea.vmem [#allocation6], %s193
          %s195 = smul.u32 2, %s18
          %s197 = ssub.s32 512, 512
          %198 = vsyncadd %s191, %s197
          %s199 = smul.addr %s195, 2
          %s200 = smul.addr %s199, 128
          %s201 = scalar_lea.hbm %s1, %s200
          %s202 = sshll.u32 %s194, 4
          %s203 = int_to_ptr.vmem [resolvable:$true] %s202
          %208 = dma.hbm_to_vmem [thread:$0]  %s201, 512, %s203, %s191, 128, 128, 8
        $region32: #{tpu_custom_call.1} parent=27 // pred_fallthru
          _
      $region28: #{tpu_custom_call.1} parent=5 // pred_fallthru
        _
      %p209 = scmp.le.s32.totalorder 1, %s18
      %p210 = scmp.lt.s32.totalorder %s18, 3
      %p211 = pnand %p209, %p210
      %p212 = pneg %p211
      // Predicated region
      $region33: #{tpu_custom_call.1} parent=5 // pred_check
        _
      $region34: #{tpu_custom_call.1} parent=5 // pred_check_branch
        %214 = sbr.rel (%p211) target = $region36
      $region35: #{tpu_custom_call.1} parent=5 // pred_region
        %s215 = ssub.s32 %s18, 1
        // Predicated region
        $region37: #{tpu_custom_call.1} parent=35 // pred_check
          %p216 = pneg %p39
        $region38: #{tpu_custom_call.1} parent=35 // pred_check_branch
          %218 = sbr.rel (%p216) target = $region40
        $region39: #{tpu_custom_call.1} parent=35 // pred_region
          %219 = dma.done [#allocation5], 16
        $region40: #{tpu_custom_call.1} parent=35 // pred_fallthru
          _
        %s220 = sand.u32 %s52, 1
        %s221 = scalar_lea.sflag [#allocation3], %s220
        %s222 = sand.u32 %s52, 1
        %s223 = smul.addr %s222, 32
        %s224 = scalar_lea.vmem [#allocation6], %s223
        // Predicated region
        $region41: #{tpu_custom_call.1} parent=35 // pred_check
          %p225 = pneg %p65
        $region42: #{tpu_custom_call.1} parent=35 // pred_check_branch
          %227 = sbr.rel (%p225) target = $region44
        $region43: #{tpu_custom_call.1} parent=35 // pred_region
          %228 = dma.done %s221, 512
        $region44: #{tpu_custom_call.1} parent=35 // pred_fallthru
          _
        // Predicated region
        $region45: #{tpu_custom_call.1} parent=35 // pred_check
          %p229 = pneg %p86
        $region46: #{tpu_custom_call.1} parent=35 // pred_check_branch
          %231 = sbr.rel (%p229) target = $region48
        $region47: #{tpu_custom_call.1} parent=35 // pred_region
          %232 = dma.done [#allocation8], 256
        $region48: #{tpu_custom_call.1} parent=35 // pred_fallthru
          _
        // Predicated region
        $region49: #{tpu_custom_call.1} parent=35 // pred_check
          %p233 = pneg %p107
        $region50: #{tpu_custom_call.1} parent=35 // pred_check_branch
          %235 = sbr.rel (%p233) target = $region52
        $region51: #{tpu_custom_call.1} parent=35 // pred_region
          %236 = dma.done [#allocation8], 1024
        $region52: #{tpu_custom_call.1} parent=35 // pred_fallthru
          _
        %237 = sfence
        %p238 = pneg %p39
        %p239 = pneg %p36
        %s240 = sand.u32 %s52, 1
        %s241 = scalar_lea.sflag [#allocation3], %s240
        %s242 = sand.u32 %s52, 1
        %s243 = smul.addr %s242, 32
        %s244 = scalar_lea.vmem [#allocation6], %s243
        %p245 = pneg %p65
        %p246 = pneg %p62
        %p247 = pneg %p86
        %p248 = pneg %p83
        %p249 = pneg %p107
        %p250 = pneg %p104
        %p251 = pneg %p133
        %p252 = pneg %p130
        %s253 = sand.u32 %s120, 1
        %s254 = scalar_lea.sflag [#allocation4], %s253
        %s255 = sand.u32 %s120, 1
        %s256 = smul.addr %s255, 32
        %s257 = scalar_lea.vmem [#allocation10], %s256
        %s258 = smul.u32 2, %s23
        %s259 = smul.u32 2, %s23
        %v261 = vld [vmem:[%s224] sm:$0xff]
        %v262 = vld [vmem:[%s224 + $0x8] sm:$0xff]
        %v263 = vld [vmem:[%s224 + $0x10] sm:$0xff]
        %v264 = vld [vmem:[%s224 + $0x18] sm:$0xff]
        %v265 = vpack.c.bf16 %v262, %v261
        %v266 = vpack.c.bf16 %v264, %v263
        %v267 = vld [vmem:[#allocation7] sm:$0xf]
        %v268 = vld [vmem:[#allocation7 + $0x4] sm:$0xf]
        %v269 = vld [vmem:[#allocation7 + $0x8] sm:$0xf]
        %v270 = vld [vmem:[#allocation7 + $0xc] sm:$0xf]
        %v275 = vunpack.c.l.b16 %v267
        %v276 = vunpack.c.l.b16 %v268
        %v277 = vunpack.c.l.b16 %v269
        %v278 = vunpack.c.l.b16 %v270
        %v279 = vpack.c.b16 %v276, %v275
        %v280 = vpack.c.b16 %v278, %v277
        %vm283 = vcmask 261120
        %v285 = vsel %vm283, %v265, 0
        %v288 = vsel %vm283, %v266, 0
        %290 = vmatprep.subr.bf16.mxu0 0
        %291 = vmatpush1.bf16.msra.mxu0 0
        %292 = vmatprep.subr.bf16.mxu0 0
        %293 = vmatpush1.bf16.msra.mxu0 0
        %294 = vmatprep.subr.bf16.mxu0 0
        %295 = vmatpush1.bf16.msra.mxu0 0
        %296 = vmatprep.subr.bf16.mxu0 0
        %297 = vmatpush1.bf16.msra.mxu0 0
        %298 = vmatprep.subr.bf16.mxu0 0
        %299 = vmatpush1.bf16.msra.mxu0 0
        %300 = vmatprep.subr.bf16.mxu0 0
        %301 = vmatpush1.bf16.msra.mxu0 0
        %302 = vmatprep.subr.bf16.mxu0 0
        %303 = vmatpush1.bf16.msra.mxu0 %v280
        %304 = vmatprep.subr.bf16.mxu0 0
        %305 = vmatpush1.bf16.msra.mxu0 %v279
        %306 = vmatprep.subr.bf16.mxu0 0
        %307 = vmatpush2.bf16.msra.mxu0 0
        %308 = vmatprep.subr.bf16.mxu0 0
        %309 = vmatpush2.bf16.msra.mxu0 0
        %310 = vmatprep.subr.bf16.mxu0 0
        %311 = vmatpush2.bf16.msra.mxu0 0
        %312 = vmatprep.subr.bf16.mxu0 0
        %313 = vmatpush2.bf16.msra.mxu0 0
        %314 = vmatprep.subr.bf16.mxu0 0
        %315 = vmatpush2.bf16.msra.mxu0 0
        %316 = vmatprep.subr.bf16.mxu0 0
        %317 = vmatpush2.bf16.msra.mxu0 0
        %318 = vmatprep.subr.bf16.mxu0 0
        %319 = vmatpush2.bf16.msra.mxu0 0
        %320 = vmatprep.subr.bf16.mxu0 0
        %321 = vmatpush2.bf16.msra.mxu0 0
        %322 = vmatprep.mubr.bf16.mxu0 0
        %323 = vmatmul.mubr.bf16.gmra.mxu0 %v285
        %v324 = vpop.f32.mrf.mxu0
        %v325 = vadd.f32 0.0, %v324
        %v326 = vpop.f32.mrf.mxu0
        %v327 = vpop.f32.mrf.mxu0
        %v328 = vadd.f32 0.0, %v327
        %v329 = vpop.f32.mrf.mxu0
        %330 = vmatprep.mubr.bf16.mxu0 0
        %331 = vmatmul.mubr.bf16.gmra.mxu0 %v288
        %v332 = vpop.f32.mrf.mxu0
        %v333 = vadd.f32 0.0, %v332
        %v334 = vpop.f32.mrf.mxu0
        %v335 = vpop.f32.mrf.mxu0
        %v336 = vadd.f32 0.0, %v335
        %v337 = vpop.f32.mrf.mxu0
        %338 = vdwg.mxu0
        %v339 = vmul.f32 %v325, %v325
        %v340 = vmul.f32 %v328, %v328
        %v341 = vmul.f32 %v333, %v333
        %v342 = vmul.f32 %v336, %v336
        %vm343 = vcmask 64512
        %v344 = vsel %vm343, %v339, 0.0
        %345 = vadd.xlane.f32.xlu0 %v344
        %v346 = vpop.xlane.xlu0 %345
        %v347 = vsel %vm343, %v340, 0.0
        %348 = vadd.xlane.f32.xlu0 %v347
        %v349 = vpop.xlane.xlu0 %348
        %v350 = vsel %vm343, %v341, 0.0
        %351 = vadd.xlane.f32.xlu0 %v350
        %v352 = vpop.xlane.xlu0 %351
        %v353 = vsel %vm343, %v342, 0.0
        %354 = vadd.xlane.f32.xlu0 %v353
        %v355 = vpop.xlane.xlu0 %354
        %v356 = vrsqrt.pop %v346
        %v357 = vrsqrt.pop %v349
        %v358 = vrsqrt.pop %v352
        %v359 = vrsqrt.pop %v355
        %v360 = vmin.f32 %v356, 1e+12
        %v361 = vmin.f32 %v357, 1e+12
        %v362 = vmin.f32 %v358, 1e+12
        %v363 = vmin.f32 %v359, 1e+12
        %v364 = vmul.f32 %v325, %v360
        %v365 = vmul.f32 %v328, %v361
        %v366 = vmul.f32 %v333, %v362
        %v367 = vmul.f32 %v336, %v363
        %s368 = sld [smem:[#allocation2]]
        %v369 = vstv %s368
        %v370 = vmul.f32 %v364, %v369
        %v371 = vmul.f32 %v365, %v369
        %v372 = vmul.f32 %v366, %v369
        %v373 = vmul.f32 %v367, %v369
        %378 = vrot.lane.b32.xlu0 %v339, 96
        %v379 = vpop.permute.xlu0 %378
        %380 = vrot.lane.b32.xlu0 %v340, 96
        %v381 = vpop.permute.xlu0 %380
        %382 = vrot.lane.b32.xlu0 %v341, 96
        %v383 = vpop.permute.xlu0 %382
        %384 = vrot.lane.b32.xlu0 %v342, 96
        %v385 = vpop.permute.xlu0 %384
        %v390 = vsel %vm343, %v379, 0.0
        %391 = vadd.xlane.f32.xlu0 %v390
        %v392 = vpop.xlane.xlu0 %391
        %v393 = vsel %vm343, %v381, 0.0
        %394 = vadd.xlane.f32.xlu0 %v393
        %v395 = vpop.xlane.xlu0 %394
        %v396 = vsel %vm343, %v383, 0.0
        %397 = vadd.xlane.f32.xlu0 %v396
        %v398 = vpop.xlane.xlu0 %397
        %v399 = vsel %vm343, %v385, 0.0
        %400 = vadd.xlane.f32.xlu0 %v399
        %v401 = vpop.xlane.xlu0 %400
        %v402 = vrsqrt.pop %v392
        %v403 = vrsqrt.pop %v395
        %v404 = vrsqrt.pop %v398
        %v405 = vrsqrt.pop %v401
        %v406 = vmin.f32 %v402, 1e+12
        %v407 = vmin.f32 %v403, 1e+12
        %v408 = vmin.f32 %v404, 1e+12
        %v409 = vmin.f32 %v405, 1e+12
        %v410 = vmul.f32 %v325, %v406
        %v411 = vmul.f32 %v328, %v407
        %v412 = vmul.f32 %v333, %v408
        %v413 = vmul.f32 %v336, %v409
        %v414 = vpack.c.bf16 %v371, %v370
        %v415 = vpack.c.bf16 %v373, %v372
        %v416 = vpack.c.bf16 %v411, %v410
        %v417 = vpack.c.bf16 %v413, %v412
        %v418 = vld [vmem:[#allocation9] sm:$0xff]
        %v419 = vld [vmem:[#allocation9 + $0x8] sm:$0xff]
        %421 = vrot.lane.b32.xlu0 %v416, 96
        %v422 = vpop.permute.xlu0 %421
        %v424 = vsel %vm343, %v414, 0
        %v427 = vsel %vm343, %v422, 0
        %429 = vmatprep.subr.bf16.mxu0 0
        %430 = vmatpush1.bf16.xpose.msra.mxu0 0
        %431 = vmatprep.subr.bf16.mxu0 0
        %432 = vmatpush1.bf16.xpose.msra.mxu0 0
        %433 = vmatprep.subr.bf16.mxu0 0
        %434 = vmatpush1.bf16.xpose.msra.mxu0 0
        %435 = vmatprep.subr.bf16.mxu0 0
        %436 = vmatpush1.bf16.xpose.msra.mxu0 0
        %437 = vmatprep.subr.bf16.mxu0 0
        %438 = vmatpush1.bf16.xpose.msra.mxu0 0
        %439 = vmatprep.subr.bf16.mxu0 0
        %440 = vmatpush1.bf16.xpose.msra.mxu0 0
        %441 = vmatprep.subr.bf16.mxu0 0
        %442 = vmatpush1.bf16.xpose.msra.mxu0 0
        %443 = vmatprep.subr.bf16.mxu0 0
        %444 = vmatpush1.bf16.xpose.msra.mxu0 %v427
        %445 = vmatprep.subr.bf16.mxu0 0
        %446 = vmatpush2.bf16.xpose.msra.mxu0 0
        %447 = vmatprep.subr.bf16.mxu0 0
        %448 = vmatpush2.bf16.xpose.msra.mxu0 0
        %449 = vmatprep.subr.bf16.mxu0 0
        %450 = vmatpush2.bf16.xpose.msra.mxu0 0
        %451 = vmatprep.subr.bf16.mxu0 0
        %452 = vmatpush2.bf16.xpose.msra.mxu0 0
        %453 = vmatprep.subr.bf16.mxu0 0
        %454 = vmatpush2.bf16.xpose.msra.mxu0 0
        %455 = vmatprep.subr.bf16.mxu0 0
        %456 = vmatpush2.bf16.xpose.msra.mxu0 0
        %457 = vmatprep.subr.bf16.mxu0 0
        %458 = vmatpush2.bf16.xpose.msra.mxu0 0
        %459 = vmatprep.subr.bf16.mxu0 0
        %460 = vmatpush2.bf16.xpose.msra.mxu0 0
        %461 = vmatprep.mubr.bf16.mxu0 0
        %462 = vmatmul.mubr.bf16.gmra.mxu0 %v424
        %v463 = vpop.f32.mrf.mxu0
        %v464 = vadd.f32 %v418, %v463
        %v465 = vpop.f32.mrf.mxu0
        %v466 = vpop.f32.mrf.mxu0
        %v467 = vadd.f32 %v419, %v466
        %v468 = vpop.f32.mrf.mxu0
        %469 = vdwg.mxu0
        %471 = vrot.lane.b32.xlu0 %v417, 96
        %v472 = vpop.permute.xlu0 %471
        %v474 = vsel %vm343, %v415, 0
        %v477 = vsel %vm343, %v472, 0
        %479 = vmatprep.subr.bf16.mxu0 0
        %480 = vmatpush1.bf16.xpose.msra.mxu0 0
        %481 = vmatprep.subr.bf16.mxu0 0
        %482 = vmatpush1.bf16.xpose.msra.mxu0 0
        %483 = vmatprep.subr.bf16.mxu0 0
        %484 = vmatpush1.bf16.xpose.msra.mxu0 0
        %485 = vmatprep.subr.bf16.mxu0 0
        %486 = vmatpush1.bf16.xpose.msra.mxu0 0
        %487 = vmatprep.subr.bf16.mxu0 0
        %488 = vmatpush1.bf16.xpose.msra.mxu0 0
        %489 = vmatprep.subr.bf16.mxu0 0
        %490 = vmatpush1.bf16.xpose.msra.mxu0 0
        %491 = vmatprep.subr.bf16.mxu0 0
        %492 = vmatpush1.bf16.xpose.msra.mxu0 0
        %493 = vmatprep.subr.bf16.mxu0 0
        %494 = vmatpush1.bf16.xpose.msra.mxu0 %v477
        %495 = vmatprep.subr.bf16.mxu0 0
        %496 = vmatpush2.bf16.xpose.msra.mxu0 0
        %497 = vmatprep.subr.bf16.mxu0 0
        %498 = vmatpush2.bf16.xpose.msra.mxu0 0
        %499 = vmatprep.subr.bf16.mxu0 0
        %500 = vmatpush2.bf16.xpose.msra.mxu0 0
        %501 = vmatprep.subr.bf16.mxu0 0
        %502 = vmatpush2.bf16.xpose.msra.mxu0 0
        %503 = vmatprep.subr.bf16.mxu0 0
        %504 = vmatpush2.bf16.xpose.msra.mxu0 0
        %505 = vmatprep.subr.bf16.mxu0 0
        %506 = vmatpush2.bf16.xpose.msra.mxu0 0
        %507 = vmatprep.subr.bf16.mxu0 0
        %508 = vmatpush2.bf16.xpose.msra.mxu0 0
        %509 = vmatprep.subr.bf16.mxu0 0
        %510 = vmatpush2.bf16.xpose.msra.mxu0 0
        %511 = vmatprep.mubr.bf16.mxu0 0
        %512 = vmatmul.mubr.bf16.gmra.mxu0 %v474
        %v513 = vpop.f32.mrf.mxu0
        %v514 = vadd.f32 %v418, %v513
        %v515 = vpop.f32.mrf.mxu0
        %v516 = vpop.f32.mrf.mxu0
        %v517 = vadd.f32 %v419, %v516
        %v518 = vpop.f32.mrf.mxu0
        %519 = vdwg.mxu0
        %vm520 = vcmask 130048
        %v521 = vsel %vm520, %v464, -inf
        %522 = vmax.xlane.f32.xlu0 %v521
        %v523 = vpop.xlane.xlu0 %522
        %v524 = vsel %vm520, %v467, -inf
        %525 = vmax.xlane.f32.xlu0 %v524
        %v526 = vpop.xlane.xlu0 %525
        %v527 = vsel %vm520, %v514, -inf
        %528 = vmax.xlane.f32.xlu0 %v527
        %v529 = vpop.xlane.xlu0 %528
        %v530 = vsel %vm520, %v517, -inf
        %531 = vmax.xlane.f32.xlu0 %v530
        %v532 = vpop.xlane.xlu0 %531
        %v533 = vsub.f32 %v464, %v523
        %v534 = vsub.f32 %v467, %v526
        %v535 = vsub.f32 %v514, %v529
        %v536 = vsub.f32 %v517, %v532
        %v537 = vmul.f32 %v533, 1.442695
        %v538 = vpow.pop %v537
        %v539 = vmul.f32 %v534, 1.442695
        %v540 = vpow.pop %v539
        %v541 = vmul.f32 %v535, 1.442695
        %v542 = vpow.pop %v541
        %v543 = vmul.f32 %v536, 1.442695
        %v544 = vpow.pop %v543
        %v545 = vsel %vm520, %v538, 0.0
        %546 = vadd.xlane.f32.xlu0 %v545
        %v547 = vpop.xlane.xlu0 %546
        %v548 = vsel %vm520, %v540, 0.0
        %549 = vadd.xlane.f32.xlu0 %v548
        %v550 = vpop.xlane.xlu0 %549
        %v551 = vsel %vm520, %v542, 0.0
        %552 = vadd.xlane.f32.xlu0 %v551
        %v553 = vpop.xlane.xlu0 %552
        %v554 = vsel %vm520, %v544, 0.0
        %555 = vadd.xlane.f32.xlu0 %v554
        %v556 = vpop.xlane.xlu0 %555
        %v557 = vrcp.pop %v547
        %v558 = vrcp.pop %v550
        %v559 = vrcp.pop %v553
        %v560 = vrcp.pop %v556
        %v561 = vmul.f32 %v538, %v557
        %v562 = vmul.f32 %v540, %v558
        %v563 = vmul.f32 %v542, %v559
        %v564 = vmul.f32 %v544, %v560
        %v565 = vpack.c.bf16 %v562, %v561
        %v566 = vpack.c.bf16 %v564, %v563
        %v567 = vpack.c.bf16 %v328, %v325
        %v568 = vpack.c.bf16 %v336, %v333
        %570 = vrot.lane.b32.xlu0 %v567, 64
        %v571 = vpop.permute.xlu0 %570
        %v574 = vsel %vm520, %v565, 0
        %576 = vmatprep.subr.bf16.mxu0 0
        %577 = vmatpush1.bf16.msra.mxu0 0
        %578 = vmatprep.subr.bf16.mxu0 0
        %579 = vmatpush1.bf16.msra.mxu0 0
        %580 = vmatprep.subr.bf16.mxu0 0
        %581 = vmatpush1.bf16.msra.mxu0 0
        %582 = vmatprep.subr.bf16.mxu0 0
        %583 = vmatpush1.bf16.msra.mxu0 0
        %584 = vmatprep.subr.bf16.mxu0 0
        %585 = vmatpush1.bf16.msra.mxu0 0
        %586 = vmatprep.subr.bf16.mxu0 0
        %587 = vmatpush1.bf16.msra.mxu0 0
        %588 = vmatprep.subr.bf16.mxu0 0
        %589 = vmatpush1.bf16.msra.mxu0 0
        %590 = vmatprep.subr.bf16.mxu0 0
        %591 = vmatpush1.bf16.msra.mxu0 %v571
        %592 = vmatprep.subr.bf16.mxu0 0
        %593 = vmatpush2.bf16.msra.mxu0 0
        %594 = vmatprep.subr.bf16.mxu0 0
        %595 = vmatpush2.bf16.msra.mxu0 0
        %596 = vmatprep.subr.bf16.mxu0 0
        %597 = vmatpush2.bf16.msra.mxu0 0
        %598 = vmatprep.subr.bf16.mxu0 0
        %599 = vmatpush2.bf16.msra.mxu0 0
        %600 = vmatprep.subr.bf16.mxu0 0
        %601 = vmatpush2.bf16.msra.mxu0 0
        %602 = vmatprep.subr.bf16.mxu0 0
        %603 = vmatpush2.bf16.msra.mxu0 0
        %604 = vmatprep.subr.bf16.mxu0 0
        %605 = vmatpush2.bf16.msra.mxu0 0
        %606 = vmatprep.subr.bf16.mxu0 0
        %607 = vmatpush2.bf16.msra.mxu0 0
        %608 = vmatprep.mubr.bf16.mxu0 0
        %609 = vmatmul.mubr.bf16.gmra.mxu0 %v574
        %v610 = vpop.f32.mrf.mxu0
        %v611 = vadd.f32 0.0, %v610
        %v612 = vpop.f32.mrf.mxu0
        %v613 = vpop.f32.mrf.mxu0
        %v614 = vadd.f32 0.0, %v613
        %v615 = vpop.f32.mrf.mxu0
        %616 = vdwg.mxu0
        %618 = vrot.lane.b32.xlu0 %v568, 64
        %v619 = vpop.permute.xlu0 %618
        %v622 = vsel %vm520, %v566, 0
        %624 = vmatprep.subr.bf16.mxu0 0
        %625 = vmatpush1.bf16.msra.mxu0 0
        %626 = vmatprep.subr.bf16.mxu0 0
        %627 = vmatpush1.bf16.msra.mxu0 0
        %628 = vmatprep.subr.bf16.mxu0 0
        %629 = vmatpush1.bf16.msra.mxu0 0
        %630 = vmatprep.subr.bf16.mxu0 0
        %631 = vmatpush1.bf16.msra.mxu0 0
        %632 = vmatprep.subr.bf16.mxu0 0
        %633 = vmatpush1.bf16.msra.mxu0 0
        %634 = vmatprep.subr.bf16.mxu0 0
        %635 = vmatpush1.bf16.msra.mxu0 0
        %636 = vmatprep.subr.bf16.mxu0 0
        %637 = vmatpush1.bf16.msra.mxu0 0
        %638 = vmatprep.subr.bf16.mxu0 0
        %639 = vmatpush1.bf16.msra.mxu0 %v619
        %640 = vmatprep.subr.bf16.mxu0 0
        %641 = vmatpush2.bf16.msra.mxu0 0
        %642 = vmatprep.subr.bf16.mxu0 0
        %643 = vmatpush2.bf16.msra.mxu0 0
        %644 = vmatprep.subr.bf16.mxu0 0
        %645 = vmatpush2.bf16.msra.mxu0 0
        %646 = vmatprep.subr.bf16.mxu0 0
        %647 = vmatpush2.bf16.msra.mxu0 0
        %648 = vmatprep.subr.bf16.mxu0 0
        %649 = vmatpush2.bf16.msra.mxu0 0
        %650 = vmatprep.subr.bf16.mxu0 0
        %651 = vmatpush2.bf16.msra.mxu0 0
        %652 = vmatprep.subr.bf16.mxu0 0
        %653 = vmatpush2.bf16.msra.mxu0 0
        %654 = vmatprep.subr.bf16.mxu0 0
        %655 = vmatpush2.bf16.msra.mxu0 0
        %656 = vmatprep.mubr.bf16.mxu0 0
        %657 = vmatmul.mubr.bf16.gmra.mxu0 %v622
        %v658 = vpop.f32.mrf.mxu0
        %v659 = vadd.f32 0.0, %v658
        %v660 = vpop.f32.mrf.mxu0
        %v661 = vpop.f32.mrf.mxu0
        %v662 = vadd.f32 0.0, %v661
        %v663 = vpop.f32.mrf.mxu0
        %664 = vdwg.mxu0
        %665 = vrot.lane.b32.xlu0 %v339, 120
        %v666 = vpop.permute.xlu0 %665
        %667 = vrot.lane.b32.xlu0 %v340, 120
        %v668 = vpop.permute.xlu0 %667
        %669 = vrot.lane.b32.xlu0 %v341, 120
        %v670 = vpop.permute.xlu0 %669
        %671 = vrot.lane.b32.xlu0 %v342, 120
        %v672 = vpop.permute.xlu0 %671
        %v677 = vsel %vm343, %v666, 0.0
        %678 = vadd.xlane.f32.xlu0 %v677
        %v679 = vpop.xlane.xlu0 %678
        %v680 = vsel %vm343, %v668, 0.0
        %681 = vadd.xlane.f32.xlu0 %v680
        %v682 = vpop.xlane.xlu0 %681
        %v683 = vsel %vm343, %v670, 0.0
        %684 = vadd.xlane.f32.xlu0 %v683
        %v685 = vpop.xlane.xlu0 %684
        %v686 = vsel %vm343, %v672, 0.0
        %687 = vadd.xlane.f32.xlu0 %v686
        %v688 = vpop.xlane.xlu0 %687
        %v689 = vrsqrt.pop %v679
        %v690 = vrsqrt.pop %v682
        %v691 = vrsqrt.pop %v685
        %v692 = vrsqrt.pop %v688
        %v693 = vmin.f32 %v689, 1e+12
        %v694 = vmin.f32 %v690, 1e+12
        %v695 = vmin.f32 %v691, 1e+12
        %v696 = vmin.f32 %v692, 1e+12
        %v697 = vmul.f32 %v325, %v693
        %v698 = vmul.f32 %v328, %v694
        %v699 = vmul.f32 %v333, %v695
        %v700 = vmul.f32 %v336, %v696
        %s701 = sld [smem:[#allocation2 + $0x1]]
        %v702 = vstv %s701
        %v703 = vmul.f32 %v697, %v702
        %v704 = vmul.f32 %v698, %v702
        %v705 = vmul.f32 %v699, %v702
        %v706 = vmul.f32 %v700, %v702
        %707 = vrot.lane.b32.xlu0 %v339, 88
        %v708 = vpop.permute.xlu0 %707
        %709 = vrot.lane.b32.xlu0 %v340, 88
        %v710 = vpop.permute.xlu0 %709
        %711 = vrot.lane.b32.xlu0 %v341, 88
        %v712 = vpop.permute.xlu0 %711
        %713 = vrot.lane.b32.xlu0 %v342, 88
        %v714 = vpop.permute.xlu0 %713
        %v719 = vsel %vm343, %v708, 0.0
        %720 = vadd.xlane.f32.xlu0 %v719
        %v721 = vpop.xlane.xlu0 %720
        %v722 = vsel %vm343, %v710, 0.0
        %723 = vadd.xlane.f32.xlu0 %v722
        %v724 = vpop.xlane.xlu0 %723
        %v725 = vsel %vm343, %v712, 0.0
        %726 = vadd.xlane.f32.xlu0 %v725
        %v727 = vpop.xlane.xlu0 %726
        %v728 = vsel %vm343, %v714, 0.0
        %729 = vadd.xlane.f32.xlu0 %v728
        %v730 = vpop.xlane.xlu0 %729
        %v731 = vrsqrt.pop %v721
        %v732 = vrsqrt.pop %v724
        %v733 = vrsqrt.pop %v727
        %v734 = vrsqrt.pop %v730
        %v735 = vmin.f32 %v731, 1e+12
        %v736 = vmin.f32 %v732, 1e+12
        %v737 = vmin.f32 %v733, 1e+12
        %v738 = vmin.f32 %v734, 1e+12
        %v739 = vmul.f32 %v325, %v735
        %v740 = vmul.f32 %v328, %v736
        %v741 = vmul.f32 %v333, %v737
        %v742 = vmul.f32 %v336, %v738
        %v743 = vpack.c.bf16 %v704, %v703
        %v744 = vpack.c.bf16 %v706, %v705
        %v745 = vpack.c.bf16 %v740, %v739
        %v746 = vpack.c.bf16 %v742, %v741
        %s747 = scalar_lea.vmem [#allocation9], 16
        %v748 = vld [vmem:[%s747] sm:$0xff]
        %v749 = vld [vmem:[%s747 + $0x8] sm:$0xff]
        %751 = vrot.lane.b32.xlu0 %v743, 120
        %v752 = vpop.permute.xlu0 %751
        %754 = vrot.lane.b32.xlu0 %v745, 88
        %v755 = vpop.permute.xlu0 %754
        %v757 = vsel %vm343, %v752, 0
        %v760 = vsel %vm343, %v755, 0
        %762 = vmatprep.subr.bf16.mxu0 0
        %763 = vmatpush1.bf16.xpose.msra.mxu0 0
        %764 = vmatprep.subr.bf16.mxu0 0
        %765 = vmatpush1.bf16.xpose.msra.mxu0 0
        %766 = vmatprep.subr.bf16.mxu0 0
        %767 = vmatpush1.bf16.xpose.msra.mxu0 0
        %768 = vmatprep.subr.bf16.mxu0 0
        %769 = vmatpush1.bf16.xpose.msra.mxu0 0
        %770 = vmatprep.subr.bf16.mxu0 0
        %771 = vmatpush1.bf16.xpose.msra.mxu0 0
        %772 = vmatprep.subr.bf16.mxu0 0
        %773 = vmatpush1.bf16.xpose.msra.mxu0 0
        %774 = vmatprep.subr.bf16.mxu0 0
        %775 = vmatpush1.bf16.xpose.msra.mxu0 0
        %776 = vmatprep.subr.bf16.mxu0 0
        %777 = vmatpush1.bf16.xpose.msra.mxu0 %v760
        %778 = vmatprep.subr.bf16.mxu0 0
        %779 = vmatpush2.bf16.xpose.msra.mxu0 0
        %780 = vmatprep.subr.bf16.mxu0 0
        %781 = vmatpush2.bf16.xpose.msra.mxu0 0
        %782 = vmatprep.subr.bf16.mxu0 0
        %783 = vmatpush2.bf16.xpose.msra.mxu0 0
        %784 = vmatprep.subr.bf16.mxu0 0
        %785 = vmatpush2.bf16.xpose.msra.mxu0 0
        %786 = vmatprep.subr.bf16.mxu0 0
        %787 = vmatpush2.bf16.xpose.msra.mxu0 0
        %788 = vmatprep.subr.bf16.mxu0 0
        %789 = vmatpush2.bf16.xpose.msra.mxu0 0
        %790 = vmatprep.subr.bf16.mxu0 0
        %791 = vmatpush2.bf16.xpose.msra.mxu0 0
        %792 = vmatprep.subr.bf16.mxu0 0
        %793 = vmatpush2.bf16.xpose.msra.mxu0 0
        %794 = vmatprep.mubr.bf16.mxu0 0
        %795 = vmatmul.mubr.bf16.gmra.mxu0 %v757
        %v796 = vpop.f32.mrf.mxu0
        %v797 = vadd.f32 %v748, %v796
        %v798 = vpop.f32.mrf.mxu0
        %v799 = vpop.f32.mrf.mxu0
        %v800 = vadd.f32 %v749, %v799
        %v801 = vpop.f32.mrf.mxu0
        %802 = vdwg.mxu0
        %804 = vrot.lane.b32.xlu0 %v744, 120
        %v805 = vpop.permute.xlu0 %804
        %807 = vrot.lane.b32.xlu0 %v746, 88
        %v808 = vpop.permute.xlu0 %807
        %v810 = vsel %vm343, %v805, 0
        %v813 = vsel %vm343, %v808, 0
        %815 = vmatprep.subr.bf16.mxu0 0
        %816 = vmatpush1.bf16.xpose.msra.mxu0 0
        %817 = vmatprep.subr.bf16.mxu0 0
        %818 = vmatpush1.bf16.xpose.msra.mxu0 0
        %819 = vmatprep.subr.bf16.mxu0 0
        %820 = vmatpush1.bf16.xpose.msra.mxu0 0
        %821 = vmatprep.subr.bf16.mxu0 0
        %822 = vmatpush1.bf16.xpose.msra.mxu0 0
        %823 = vmatprep.subr.bf16.mxu0 0
        %824 = vmatpush1.bf16.xpose.msra.mxu0 0
        %825 = vmatprep.subr.bf16.mxu0 0
        %826 = vmatpush1.bf16.xpose.msra.mxu0 0
        %827 = vmatprep.subr.bf16.mxu0 0
        %828 = vmatpush1.bf16.xpose.msra.mxu0 0
        %829 = vmatprep.subr.bf16.mxu0 0
        %830 = vmatpush1.bf16.xpose.msra.mxu0 %v813
        %831 = vmatprep.subr.bf16.mxu0 0
        %832 = vmatpush2.bf16.xpose.msra.mxu0 0
        %833 = vmatprep.subr.bf16.mxu0 0
        %834 = vmatpush2.bf16.xpose.msra.mxu0 0
        %835 = vmatprep.subr.bf16.mxu0 0
        %836 = vmatpush2.bf16.xpose.msra.mxu0 0
        %837 = vmatprep.subr.bf16.mxu0 0
        %838 = vmatpush2.bf16.xpose.msra.mxu0 0
        %839 = vmatprep.subr.bf16.mxu0 0
        %840 = vmatpush2.bf16.xpose.msra.mxu0 0
        %841 = vmatprep.subr.bf16.mxu0 0
        %842 = vmatpush2.bf16.xpose.msra.mxu0 0
        %843 = vmatprep.subr.bf16.mxu0 0
        %844 = vmatpush2.bf16.xpose.msra.mxu0 0
        %845 = vmatprep.subr.bf16.mxu0 0
        %846 = vmatpush2.bf16.xpose.msra.mxu0 0
        %847 = vmatprep.mubr.bf16.mxu0 0
        %848 = vmatmul.mubr.bf16.gmra.mxu0 %v810
        %v849 = vpop.f32.mrf.mxu0
        %v850 = vadd.f32 %v748, %v849
        %v851 = vpop.f32.mrf.mxu0
        %v852 = vpop.f32.mrf.mxu0
        %v853 = vadd.f32 %v749, %v852
        %v854 = vpop.f32.mrf.mxu0
        %855 = vdwg.mxu0
        %v856 = vsel %vm520, %v797, -inf
        %857 = vmax.xlane.f32.xlu0 %v856
        %v858 = vpop.xlane.xlu0 %857
        %v859 = vsel %vm520, %v800, -inf
        %860 = vmax.xlane.f32.xlu0 %v859
        %v861 = vpop.xlane.xlu0 %860
        %v862 = vsel %vm520, %v850, -inf
        %863 = vmax.xlane.f32.xlu0 %v862
        %v864 = vpop.xlane.xlu0 %863
        %v865 = vsel %vm520, %v853, -inf
        %866 = vmax.xlane.f32.xlu0 %v865
        %v867 = vpop.xlane.xlu0 %866
        %v868 = vsub.f32 %v797, %v858
        %v869 = vsub.f32 %v800, %v861
        %v870 = vsub.f32 %v850, %v864
        %v871 = vsub.f32 %v853, %v867
        %v872 = vmul.f32 %v868, 1.442695
        %v873 = vpow.pop %v872
        %v874 = vmul.f32 %v869, 1.442695
        %v875 = vpow.pop %v874
        %v876 = vmul.f32 %v870, 1.442695
        %v877 = vpow.pop %v876
        %v878 = vmul.f32 %v871, 1.442695
        %v879 = vpow.pop %v878
        %v880 = vsel %vm520, %v873, 0.0
        %881 = vadd.xlane.f32.xlu0 %v880
        %v882 = vpop.xlane.xlu0 %881
        %v883 = vsel %vm520, %v875, 0.0
        %884 = vadd.xlane.f32.xlu0 %v883
        %v885 = vpop.xlane.xlu0 %884
        %v886 = vsel %vm520, %v877, 0.0
        %887 = vadd.xlane.f32.xlu0 %v886
        %v888 = vpop.xlane.xlu0 %887
        %v889 = vsel %vm520, %v879, 0.0
        %890 = vadd.xlane.f32.xlu0 %v889
        %v891 = vpop.xlane.xlu0 %890
        %v892 = vrcp.pop %v882
        %v893 = vrcp.pop %v885
        %v894 = vrcp.pop %v888
        %v895 = vrcp.pop %v891
        %v896 = vmul.f32 %v873, %v892
        %v897 = vmul.f32 %v875, %v893
        %v898 = vmul.f32 %v877, %v894
        %v899 = vmul.f32 %v879, %v895
        %v900 = vpack.c.bf16 %v897, %v896
        %v901 = vpack.c.bf16 %v899, %v898
        %902 = vrot.lane.b32.xlu0 %v567, 56
        %v903 = vpop.permute.xlu0 %902
        %v906 = vsel %vm520, %v900, 0
        %908 = vmatprep.subr.bf16.mxu0 0
        %909 = vmatpush1.bf16.msra.mxu0 0
        %910 = vmatprep.subr.bf16.mxu0 0
        %911 = vmatpush1.bf16.msra.mxu0 0
        %912 = vmatprep.subr.bf16.mxu0 0
        %913 = vmatpush1.bf16.msra.mxu0 0
        %914 = vmatprep.subr.bf16.mxu0 0
        %915 = vmatpush1.bf16.msra.mxu0 0
        %916 = vmatprep.subr.bf16.mxu0 0
        %917 = vmatpush1.bf16.msra.mxu0 0
        %918 = vmatprep.subr.bf16.mxu0 0
        %919 = vmatpush1.bf16.msra.mxu0 0
        %920 = vmatprep.subr.bf16.mxu0 0
        %921 = vmatpush1.bf16.msra.mxu0 0
        %922 = vmatprep.subr.bf16.mxu0 0
        %923 = vmatpush1.bf16.msra.mxu0 %v903
        %924 = vmatprep.subr.bf16.mxu0 0
        %925 = vmatpush2.bf16.msra.mxu0 0
        %926 = vmatprep.subr.bf16.mxu0 0
        %927 = vmatpush2.bf16.msra.mxu0 0
        %928 = vmatprep.subr.bf16.mxu0 0
        %929 = vmatpush2.bf16.msra.mxu0 0
        %930 = vmatprep.subr.bf16.mxu0 0
        %931 = vmatpush2.bf16.msra.mxu0 0
        %932 = vmatprep.subr.bf16.mxu0 0
        %933 = vmatpush2.bf16.msra.mxu0 0
        %934 = vmatprep.subr.bf16.mxu0 0
        %935 = vmatpush2.bf16.msra.mxu0 0
        %936 = vmatprep.subr.bf16.mxu0 0
        %937 = vmatpush2.bf16.msra.mxu0 0
        %938 = vmatprep.subr.bf16.mxu0 0
        %939 = vmatpush2.bf16.msra.mxu0 0
        %940 = vmatprep.mubr.bf16.mxu0 0
        %941 = vmatmul.mubr.bf16.gmra.mxu0 %v906
        %v942 = vpop.f32.mrf.mxu0
        %v943 = vadd.f32 0.0, %v942
        %v944 = vpop.f32.mrf.mxu0
        %v945 = vpop.f32.mrf.mxu0
        %v946 = vadd.f32 0.0, %v945
        %v947 = vpop.f32.mrf.mxu0
        %948 = vdwg.mxu0
        %949 = vrot.lane.b32.xlu0 %v568, 56
        %v950 = vpop.permute.xlu0 %949
        %v953 = vsel %vm520, %v901, 0
        %955 = vmatprep.subr.bf16.mxu0 0
        %956 = vmatpush1.bf16.msra.mxu0 0
        %957 = vmatprep.subr.bf16.mxu0 0
        %958 = vmatpush1.bf16.msra.mxu0 0
        %959 = vmatprep.subr.bf16.mxu0 0
        %960 = vmatpush1.bf16.msra.mxu0 0
        %961 = vmatprep.subr.bf16.mxu0 0
        %962 = vmatpush1.bf16.msra.mxu0 0
        %963 = vmatprep.subr.bf16.mxu0 0
        %964 = vmatpush1.bf16.msra.mxu0 0
        %965 = vmatprep.subr.bf16.mxu0 0
        %966 = vmatpush1.bf16.msra.mxu0 0
        %967 = vmatprep.subr.bf16.mxu0 0
        %968 = vmatpush1.bf16.msra.mxu0 0
        %969 = vmatprep.subr.bf16.mxu0 0
        %970 = vmatpush1.bf16.msra.mxu0 %v950
        %971 = vmatprep.subr.bf16.mxu0 0
        %972 = vmatpush2.bf16.msra.mxu0 0
        %973 = vmatprep.subr.bf16.mxu0 0
        %974 = vmatpush2.bf16.msra.mxu0 0
        %975 = vmatprep.subr.bf16.mxu0 0
        %976 = vmatpush2.bf16.msra.mxu0 0
        %977 = vmatprep.subr.bf16.mxu0 0
        %978 = vmatpush2.bf16.msra.mxu0 0
        %979 = vmatprep.subr.bf16.mxu0 0
        %980 = vmatpush2.bf16.msra.mxu0 0
        %981 = vmatprep.subr.bf16.mxu0 0
        %982 = vmatpush2.bf16.msra.mxu0 0
        %983 = vmatprep.subr.bf16.mxu0 0
        %984 = vmatpush2.bf16.msra.mxu0 0
        %985 = vmatprep.subr.bf16.mxu0 0
        %986 = vmatpush2.bf16.msra.mxu0 0
        %987 = vmatprep.mubr.bf16.mxu0 0
        %988 = vmatmul.mubr.bf16.gmra.mxu0 %v953
        %v989 = vpop.f32.mrf.mxu0
        %v990 = vadd.f32 0.0, %v989
        %v991 = vpop.f32.mrf.mxu0
        %v992 = vpop.f32.mrf.mxu0
        %v993 = vadd.f32 0.0, %v992
        %v994 = vpop.f32.mrf.mxu0
        %995 = vdwg.mxu0
        %996 = vrot.lane.b32.xlu0 %v339, 112
        %v997 = vpop.permute.xlu0 %996
        %998 = vrot.lane.b32.xlu0 %v340, 112
        %v999 = vpop.permute.xlu0 %998
        %1000 = vrot.lane.b32.xlu0 %v341, 112
        %v1001 = vpop.permute.xlu0 %1000
        %1002 = vrot.lane.b32.xlu0 %v342, 112
        %v1003 = vpop.permute.xlu0 %1002
        %v1008 = vsel %vm343, %v997, 0.0
        %1009 = vadd.xlane.f32.xlu0 %v1008
        %v1010 = vpop.xlane.xlu0 %1009
        %v1011 = vsel %vm343, %v999, 0.0
        %1012 = vadd.xlane.f32.xlu0 %v1011
        %v1013 = vpop.xlane.xlu0 %1012
        %v1014 = vsel %vm343, %v1001, 0.0
        %1015 = vadd.xlane.f32.xlu0 %v1014
        %v1016 = vpop.xlane.xlu0 %1015
        %v1017 = vsel %vm343, %v1003, 0.0
        %1018 = vadd.xlane.f32.xlu0 %v1017
        %v1019 = vpop.xlane.xlu0 %1018
        %v1020 = vrsqrt.pop %v1010
        %v1021 = vrsqrt.pop %v1013
        %v1022 = vrsqrt.pop %v1016
        %v1023 = vrsqrt.pop %v1019
        %v1024 = vmin.f32 %v1020, 1e+12
        %v1025 = vmin.f32 %v1021, 1e+12
        %v1026 = vmin.f32 %v1022, 1e+12
        %v1027 = vmin.f32 %v1023, 1e+12
        %v1028 = vmul.f32 %v325, %v1024
        %v1029 = vmul.f32 %v328, %v1025
        %v1030 = vmul.f32 %v333, %v1026
        %v1031 = vmul.f32 %v336, %v1027
        %s1032 = sld [smem:[#allocation2 + $0x2]]
        %v1033 = vstv %s1032
        %v1034 = vmul.f32 %v1028, %v1033
        %v1035 = vmul.f32 %v1029, %v1033
        %v1036 = vmul.f32 %v1030, %v1033
        %v1037 = vmul.f32 %v1031, %v1033
        %1038 = vrot.lane.b32.xlu0 %v339, 80
        %v1039 = vpop.permute.xlu0 %1038
        %1040 = vrot.lane.b32.xlu0 %v340, 80
        %v1041 = vpop.permute.xlu0 %1040
        %1042 = vrot.lane.b32.xlu0 %v341, 80
        %v1043 = vpop.permute.xlu0 %1042
        %1044 = vrot.lane.b32.xlu0 %v342, 80
        %v1045 = vpop.permute.xlu0 %1044
        %v1050 = vsel %vm343, %v1039, 0.0
        %1051 = vadd.xlane.f32.xlu0 %v1050
        %v1052 = vpop.xlane.xlu0 %1051
        %v1053 = vsel %vm343, %v1041, 0.0
        %1054 = vadd.xlane.f32.xlu0 %v1053
        %v1055 = vpop.xlane.xlu0 %1054
        %v1056 = vsel %vm343, %v1043, 0.0
        %1057 = vadd.xlane.f32.xlu0 %v1056
        %v1058 = vpop.xlane.xlu0 %1057
        %v1059 = vsel %vm343, %v1045, 0.0
        %1060 = vadd.xlane.f32.xlu0 %v1059
        %v1061 = vpop.xlane.xlu0 %1060
        %v1062 = vrsqrt.pop %v1052
        %v1063 = vrsqrt.pop %v1055
        %v1064 = vrsqrt.pop %v1058
        %v1065 = vrsqrt.pop %v1061
        %v1066 = vmin.f32 %v1062, 1e+12
        %v1067 = vmin.f32 %v1063, 1e+12
        %v1068 = vmin.f32 %v1064, 1e+12
        %v1069 = vmin.f32 %v1065, 1e+12
        %v1070 = vmul.f32 %v325, %v1066
        %v1071 = vmul.f32 %v328, %v1067
        %v1072 = vmul.f32 %v333, %v1068
        %v1073 = vmul.f32 %v336, %v1069
        %v1074 = vpack.c.bf16 %v1035, %v1034
        %v1075 = vpack.c.bf16 %v1037, %v1036
        %v1076 = vpack.c.bf16 %v1071, %v1070
        %v1077 = vpack.c.bf16 %v1073, %v1072
        %s1078 = scalar_lea.vmem [#allocation9], 32
        %v1079 = vld [vmem:[%s1078] sm:$0xff]
        %v1080 = vld [vmem:[%s1078 + $0x8] sm:$0xff]
        %1082 = vrot.lane.b32.xlu0 %v1074, 112
        %v1083 = vpop.permute.xlu0 %1082
        %1085 = vrot.lane.b32.xlu0 %v1076, 80
        %v1086 = vpop.permute.xlu0 %1085
        %v1088 = vsel %vm343, %v1083, 0
        %v1091 = vsel %vm343, %v1086, 0
        %1093 = vmatprep.subr.bf16.mxu0 0
        %1094 = vmatpush1.bf16.xpose.msra.mxu0 0
        %1095 = vmatprep.subr.bf16.mxu0 0
        %1096 = vmatpush1.bf16.xpose.msra.mxu0 0
        %1097 = vmatprep.subr.bf16.mxu0 0
        %1098 = vmatpush1.bf16.xpose.msra.mxu0 0
        %1099 = vmatprep.subr.bf16.mxu0 0
        %1100 = vmatpush1.bf16.xpose.msra.mxu0 0
        %1101 = vmatprep.subr.bf16.mxu0 0
        %1102 = vmatpush1.bf16.xpose.msra.mxu0 0
        %1103 = vmatprep.subr.bf16.mxu0 0
        %1104 = vmatpush1.bf16.xpose.msra.mxu0 0
        %1105 = vmatprep.subr.bf16.mxu0 0
        %1106 = vmatpush1.bf16.xpose.msra.mxu0 0
        %1107 = vmatprep.subr.bf16.mxu0 0
        %1108 = vmatpush1.bf16.xpose.msra.mxu0 %v1091
        %1109 = vmatprep.subr.bf16.mxu0 0
        %1110 = vmatpush2.bf16.xpose.msra.mxu0 0
        %1111 = vmatprep.subr.bf16.mxu0 0
        %1112 = vmatpush2.bf16.xpose.msra.mxu0 0
        %1113 = vmatprep.subr.bf16.mxu0 0
        %1114 = vmatpush2.bf16.xpose.msra.mxu0 0
        %1115 = vmatprep.subr.bf16.mxu0 0
        %1116 = vmatpush2.bf16.xpose.msra.mxu0 0
        %1117 = vmatprep.subr.bf16.mxu0 0
        %1118 = vmatpush2.bf16.xpose.msra.mxu0 0
        %1119 = vmatprep.subr.bf16.mxu0 0
        %1120 = vmatpush2.bf16.xpose.msra.mxu0 0
        %1121 = vmatprep.subr.bf16.mxu0 0
        %1122 = vmatpush2.bf16.xpose.msra.mxu0 0
        %1123 = vmatprep.subr.bf16.mxu0 0
        %1124 = vmatpush2.bf16.xpose.msra.mxu0 0
        %1125 = vmatprep.mubr.bf16.mxu0 0
        %1126 = vmatmul.mubr.bf16.gmra.mxu0 %v1088
        %v1127 = vpop.f32.mrf.mxu0
        %v1128 = vadd.f32 %v1079, %v1127
        %v1129 = vpop.f32.mrf.mxu0
        %v1130 = vpop.f32.mrf.mxu0
        %v1131 = vadd.f32 %v1080, %v1130
        %v1132 = vpop.f32.mrf.mxu0
        %1133 = vdwg.mxu0
        %1135 = vrot.lane.b32.xlu0 %v1075, 112
        %v1136 = vpop.permute.xlu0 %1135
        %1138 = vrot.lane.b32.xlu0 %v1077, 80
        %v1139 = vpop.permute.xlu0 %1138
        %v1141 = vsel %vm343, %v1136, 0
        %v1144 = vsel %vm343, %v1139, 0
        %1146 = vmatprep.subr.bf16.mxu0 0
        %1147 = vmatpush1.bf16.xpose.msra.mxu0 0
        %1148 = vmatprep.subr.bf16.mxu0 0
        %1149 = vmatpush1.bf16.xpose.msra.mxu0 0
        %1150 = vmatprep.subr.bf16.mxu0 0
        %1151 = vmatpush1.bf16.xpose.msra.mxu0 0
        %1152 = vmatprep.subr.bf16.mxu0 0
        %1153 = vmatpush1.bf16.xpose.msra.mxu0 0
        %1154 = vmatprep.subr.bf16.mxu0 0
        %1155 = vmatpush1.bf16.xpose.msra.mxu0 0
        %1156 = vmatprep.subr.bf16.mxu0 0
        %1157 = vmatpush1.bf16.xpose.msra.mxu0 0
        %1158 = vmatprep.subr.bf16.mxu0 0
        %1159 = vmatpush1.bf16.xpose.msra.mxu0 0
        %1160 = vmatprep.subr.bf16.mxu0 0
        %1161 = vmatpush1.bf16.xpose.msra.mxu0 %v1144
        %1162 = vmatprep.subr.bf16.mxu0 0
        %1163 = vmatpush2.bf16.xpose.msra.mxu0 0
        %1164 = vmatprep.subr.bf16.mxu0 0
        %1165 = vmatpush2.bf16.xpose.msra.mxu0 0
        %1166 = vmatprep.subr.bf16.mxu0 0
        %1167 = vmatpush2.bf16.xpose.msra.mxu0 0
        %1168 = vmatprep.subr.bf16.mxu0 0
        %1169 = vmatpush2.bf16.xpose.msra.mxu0 0
        %1170 = vmatprep.subr.bf16.mxu0 0
        %1171 = vmatpush2.bf16.xpose.msra.mxu0 0
        %1172 = vmatprep.subr.bf16.mxu0 0
        %1173 = vmatpush2.bf16.xpose.msra.mxu0 0
        %1174 = vmatprep.subr.bf16.mxu0 0
        %1175 = vmatpush2.bf16.xpose.msra.mxu0 0
        %1176 = vmatprep.subr.bf16.mxu0 0
        %1177 = vmatpush2.bf16.xpose.msra.mxu0 0
        %1178 = vmatprep.mubr.bf16.mxu0 0
        %1179 = vmatmul.mubr.bf16.gmra.mxu0 %v1141
        %v1180 = vpop.f32.mrf.mxu0
        %v1181 = vadd.f32 %v1079, %v1180
        %v1182 = vpop.f32.mrf.mxu0
        %v1183 = vpop.f32.mrf.mxu0
        %v1184 = vadd.f32 %v1080, %v1183
        %v1185 = vpop.f32.mrf.mxu0
        %1186 = vdwg.mxu0
        %v1187 = vsel %vm520, %v1128, -inf
        %1188 = vmax.xlane.f32.xlu0 %v1187
        %v1189 = vpop.xlane.xlu0 %1188
        %v1190 = vsel %vm520, %v1131, -inf
        %1191 = vmax.xlane.f32.xlu0 %v1190
        %v1192 = vpop.xlane.xlu0 %1191
        %v1193 = vsel %vm520, %v1181, -inf
        %1194 = vmax.xlane.f32.xlu0 %v1193
        %v1195 = vpop.xlane.xlu0 %1194
        %v1196 = vsel %vm520, %v1184, -inf
        %1197 = vmax.xlane.f32.xlu0 %v1196
        %v1198 = vpop.xlane.xlu0 %1197
        %v1199 = vsub.f32 %v1128, %v1189
        %v1200 = vsub.f32 %v1131, %v1192
        %v1201 = vsub.f32 %v1181, %v1195
        %v1202 = vsub.f32 %v1184, %v1198
        %v1203 = vmul.f32 %v1199, 1.442695
        %v1204 = vpow.pop %v1203
        %v1205 = vmul.f32 %v1200, 1.442695
        %v1206 = vpow.pop %v1205
        %v1207 = vmul.f32 %v1201, 1.442695
        %v1208 = vpow.pop %v1207
        %v1209 = vmul.f32 %v1202, 1.442695
        %v1210 = vpow.pop %v1209
        %v1211 = vsel %vm520, %v1204, 0.0
        %1212 = vadd.xlane.f32.xlu0 %v1211
        %v1213 = vpop.xlane.xlu0 %1212
        %v1214 = vsel %vm520, %v1206, 0.0
        %1215 = vadd.xlane.f32.xlu0 %v1214
        %v1216 = vpop.xlane.xlu0 %1215
        %v1217 = vsel %vm520, %v1208, 0.0
        %1218 = vadd.xlane.f32.xlu0 %v1217
        %v1219 = vpop.xlane.xlu0 %1218
        %v1220 = vsel %vm520, %v1210, 0.0
        %1221 = vadd.xlane.f32.xlu0 %v1220
        %v1222 = vpop.xlane.xlu0 %1221
        %v1223 = vrcp.pop %v1213
        %v1224 = vrcp.pop %v1216
        %v1225 = vrcp.pop %v1219
        %v1226 = vrcp.pop %v1222
        %v1227 = vmul.f32 %v1204, %v1223
        %v1228 = vmul.f32 %v1206, %v1224
        %v1229 = vmul.f32 %v1208, %v1225
        %v1230 = vmul.f32 %v1210, %v1226
        %v1231 = vpack.c.bf16 %v1228, %v1227
        %v1232 = vpack.c.bf16 %v1230, %v1229
        %1233 = vrot.lane.b32.xlu0 %v567, 48
        %v1234 = vpop.permute.xlu0 %1233
        %v1237 = vsel %vm520, %v1231, 0
        %1239 = vmatprep.subr.bf16.mxu0 0
        %1240 = vmatpush1.bf16.msra.mxu0 0
        %1241 = vmatprep.subr.bf16.mxu0 0
        %1242 = vmatpush1.bf16.msra.mxu0 0
        %1243 = vmatprep.subr.bf16.mxu0 0
        %1244 = vmatpush1.bf16.msra.mxu0 0
        %1245 = vmatprep.subr.bf16.mxu0 0
        %1246 = vmatpush1.bf16.msra.mxu0 0
        %1247 = vmatprep.subr.bf16.mxu0 0
        %1248 = vmatpush1.bf16.msra.mxu0 0
        %1249 = vmatprep.subr.bf16.mxu0 0
        %1250 = vmatpush1.bf16.msra.mxu0 0
        %1251 = vmatprep.subr.bf16.mxu0 0
        %1252 = vmatpush1.bf16.msra.mxu0 0
        %1253 = vmatprep.subr.bf16.mxu0 0
        %1254 = vmatpush1.bf16.msra.mxu0 %v1234
        %1255 = vmatprep.subr.bf16.mxu0 0
        %1256 = vmatpush2.bf16.msra.mxu0 0
        %1257 = vmatprep.subr.bf16.mxu0 0
        %1258 = vmatpush2.bf16.msra.mxu0 0
        %1259 = vmatprep.subr.bf16.mxu0 0
        %1260 = vmatpush2.bf16.msra.mxu0 0
        %1261 = vmatprep.subr.bf16.mxu0 0
        %1262 = vmatpush2.bf16.msra.mxu0 0
        %1263 = vmatprep.subr.bf16.mxu0 0
        %1264 = vmatpush2.bf16.msra.mxu0 0
        %1265 = vmatprep.subr.bf16.mxu0 0
        %1266 = vmatpush2.bf16.msra.mxu0 0
        %1267 = vmatprep.subr.bf16.mxu0 0
        %1268 = vmatpush2.bf16.msra.mxu0 0
        %1269 = vmatprep.subr.bf16.mxu0 0
        %1270 = vmatpush2.bf16.msra.mxu0 0
        %1271 = vmatprep.mubr.bf16.mxu0 0
        %1272 = vmatmul.mubr.bf16.gmra.mxu0 %v1237
        %v1273 = vpop.f32.mrf.mxu0
        %v1274 = vadd.f32 0.0, %v1273
        %v1275 = vpop.f32.mrf.mxu0
        %v1276 = vpop.f32.mrf.mxu0
        %v1277 = vadd.f32 0.0, %v1276
        %v1278 = vpop.f32.mrf.mxu0
        %1279 = vdwg.mxu0
        %1280 = vrot.lane.b32.xlu0 %v568, 48
        %v1281 = vpop.permute.xlu0 %1280
        %v1284 = vsel %vm520, %v1232, 0
        %1286 = vmatprep.subr.bf16.mxu0 0
        %1287 = vmatpush1.bf16.msra.mxu0 0
        %1288 = vmatprep.subr.bf16.mxu0 0
        %1289 = vmatpush1.bf16.msra.mxu0 0
        %1290 = vmatprep.subr.bf16.mxu0 0
        %1291 = vmatpush1.bf16.msra.mxu0 0
        %1292 = vmatprep.subr.bf16.mxu0 0
        %1293 = vmatpush1.bf16.msra.mxu0 0
        %1294 = vmatprep.subr.bf16.mxu0 0
        %1295 = vmatpush1.bf16.msra.mxu0 0
        %1296 = vmatprep.subr.bf16.mxu0 0
        %1297 = vmatpush1.bf16.msra.mxu0 0
        %1298 = vmatprep.subr.bf16.mxu0 0
        %1299 = vmatpush1.bf16.msra.mxu0 0
        %1300 = vmatprep.subr.bf16.mxu0 0
        %1301 = vmatpush1.bf16.msra.mxu0 %v1281
        %1302 = vmatprep.subr.bf16.mxu0 0
        %1303 = vmatpush2.bf16.msra.mxu0 0
        %1304 = vmatprep.subr.bf16.mxu0 0
        %1305 = vmatpush2.bf16.msra.mxu0 0
        %1306 = vmatprep.subr.bf16.mxu0 0
        %1307 = vmatpush2.bf16.msra.mxu0 0
        %1308 = vmatprep.subr.bf16.mxu0 0
        %1309 = vmatpush2.bf16.msra.mxu0 0
        %1310 = vmatprep.subr.bf16.mxu0 0
        %1311 = vmatpush2.bf16.msra.mxu0 0
        %1312 = vmatprep.subr.bf16.mxu0 0
        %1313 = vmatpush2.bf16.msra.mxu0 0
        %1314 = vmatprep.subr.bf16.mxu0 0
        %1315 = vmatpush2.bf16.msra.mxu0 0
        %1316 = vmatprep.subr.bf16.mxu0 0
        %1317 = vmatpush2.bf16.msra.mxu0 0
        %1318 = vmatprep.mubr.bf16.mxu0 0
        %1319 = vmatmul.mubr.bf16.gmra.mxu0 %v1284
        %v1320 = vpop.f32.mrf.mxu0
        %v1321 = vadd.f32 0.0, %v1320
        %v1322 = vpop.f32.mrf.mxu0
        %v1323 = vpop.f32.mrf.mxu0
        %v1324 = vadd.f32 0.0, %v1323
        %v1325 = vpop.f32.mrf.mxu0
        %1326 = vdwg.mxu0
        %1327 = vrot.lane.b32.xlu0 %v339, 104
        %v1328 = vpop.permute.xlu0 %1327
        %1329 = vrot.lane.b32.xlu0 %v340, 104
        %v1330 = vpop.permute.xlu0 %1329
        %1331 = vrot.lane.b32.xlu0 %v341, 104
        %v1332 = vpop.permute.xlu0 %1331
        %1333 = vrot.lane.b32.xlu0 %v342, 104
        %v1334 = vpop.permute.xlu0 %1333
        %v1339 = vsel %vm343, %v1328, 0.0
        %1340 = vadd.xlane.f32.xlu0 %v1339
        %v1341 = vpop.xlane.xlu0 %1340
        %v1342 = vsel %vm343, %v1330, 0.0
        %1343 = vadd.xlane.f32.xlu0 %v1342
        %v1344 = vpop.xlane.xlu0 %1343
        %v1345 = vsel %vm343, %v1332, 0.0
        %1346 = vadd.xlane.f32.xlu0 %v1345
        %v1347 = vpop.xlane.xlu0 %1346
        %v1348 = vsel %vm343, %v1334, 0.0
        %1349 = vadd.xlane.f32.xlu0 %v1348
        %v1350 = vpop.xlane.xlu0 %1349
        %v1351 = vrsqrt.pop %v1341
        %v1352 = vrsqrt.pop %v1344
        %v1353 = vrsqrt.pop %v1347
        %v1354 = vrsqrt.pop %v1350
        %v1355 = vmin.f32 %v1351, 1e+12
        %v1356 = vmin.f32 %v1352, 1e+12
        %v1357 = vmin.f32 %v1353, 1e+12
        %v1358 = vmin.f32 %v1354, 1e+12
        %v1359 = vmul.f32 %v325, %v1355
        %v1360 = vmul.f32 %v328, %v1356
        %v1361 = vmul.f32 %v333, %v1357
        %v1362 = vmul.f32 %v336, %v1358
        %s1363 = sld [smem:[#allocation2 + $0x3]]
        %v1364 = vstv %s1363
        %v1365 = vmul.f32 %v1359, %v1364
        %v1366 = vmul.f32 %v1360, %v1364
        %v1367 = vmul.f32 %v1361, %v1364
        %v1368 = vmul.f32 %v1362, %v1364
        %1369 = vrot.lane.b32.xlu0 %v339, 72
        %v1370 = vpop.permute.xlu0 %1369
        %1371 = vrot.lane.b32.xlu0 %v340, 72
        %v1372 = vpop.permute.xlu0 %1371
        %1373 = vrot.lane.b32.xlu0 %v341, 72
        %v1374 = vpop.permute.xlu0 %1373
        %1375 = vrot.lane.b32.xlu0 %v342, 72
        %v1376 = vpop.permute.xlu0 %1375
        %v1381 = vsel %vm343, %v1370, 0.0
        %1382 = vadd.xlane.f32.xlu0 %v1381
        %v1383 = vpop.xlane.xlu0 %1382
        %v1384 = vsel %vm343, %v1372, 0.0
        %1385 = vadd.xlane.f32.xlu0 %v1384
        %v1386 = vpop.xlane.xlu0 %1385
        %v1387 = vsel %vm343, %v1374, 0.0
        %1388 = vadd.xlane.f32.xlu0 %v1387
        %v1389 = vpop.xlane.xlu0 %1388
        %v1390 = vsel %vm343, %v1376, 0.0
        %1391 = vadd.xlane.f32.xlu0 %v1390
        %v1392 = vpop.xlane.xlu0 %1391
        %v1393 = vrsqrt.pop %v1383
        %v1394 = vrsqrt.pop %v1386
        %v1395 = vrsqrt.pop %v1389
        %v1396 = vrsqrt.pop %v1392
        %v1397 = vmin.f32 %v1393, 1e+12
        %v1398 = vmin.f32 %v1394, 1e+12
        %v1399 = vmin.f32 %v1395, 1e+12
        %v1400 = vmin.f32 %v1396, 1e+12
        %v1401 = vmul.f32 %v325, %v1397
        %v1402 = vmul.f32 %v328, %v1398
        %v1403 = vmul.f32 %v333, %v1399
        %v1404 = vmul.f32 %v336, %v1400
        %v1405 = vpack.c.bf16 %v1366, %v1365
        %v1406 = vpack.c.bf16 %v1368, %v1367
        %v1407 = vpack.c.bf16 %v1402, %v1401
        %v1408 = vpack.c.bf16 %v1404, %v1403
        %s1409 = scalar_lea.vmem [#allocation9], 48
        %v1410 = vld [vmem:[%s1409] sm:$0xff]
        %v1411 = vld [vmem:[%s1409 + $0x8] sm:$0xff]
        %1413 = vrot.lane.b32.xlu0 %v1405, 104
        %v1414 = vpop.permute.xlu0 %1413
        %1416 = vrot.lane.b32.xlu0 %v1407, 72
        %v1417 = vpop.permute.xlu0 %1416
        %v1419 = vsel %vm343, %v1414, 0
        %v1422 = vsel %vm343, %v1417, 0
        %1424 = vmatprep.subr.bf16.mxu0 0
        %1425 = vmatpush1.bf16.xpose.msra.mxu0 0
        %1426 = vmatprep.subr.bf16.mxu0 0
        %1427 = vmatpush1.bf16.xpose.msra.mxu0 0
        %1428 = vmatprep.subr.bf16.mxu0 0
        %1429 = vmatpush1.bf16.xpose.msra.mxu0 0
        %1430 = vmatprep.subr.bf16.mxu0 0
        %1431 = vmatpush1.bf16.xpose.msra.mxu0 0
        %1432 = vmatprep.subr.bf16.mxu0 0
        %1433 = vmatpush1.bf16.xpose.msra.mxu0 0
        %1434 = vmatprep.subr.bf16.mxu0 0
        %1435 = vmatpush1.bf16.xpose.msra.mxu0 0
        %1436 = vmatprep.subr.bf16.mxu0 0
        %1437 = vmatpush1.bf16.xpose.msra.mxu0 0
        %1438 = vmatprep.subr.bf16.mxu0 0
        %1439 = vmatpush1.bf16.xpose.msra.mxu0 %v1422
        %1440 = vmatprep.subr.bf16.mxu0 0
        %1441 = vmatpush2.bf16.xpose.msra.mxu0 0
        %1442 = vmatprep.subr.bf16.mxu0 0
        %1443 = vmatpush2.bf16.xpose.msra.mxu0 0
        %1444 = vmatprep.subr.bf16.mxu0 0
        %1445 = vmatpush2.bf16.xpose.msra.mxu0 0
        %1446 = vmatprep.subr.bf16.mxu0 0
        %1447 = vmatpush2.bf16.xpose.msra.mxu0 0
        %1448 = vmatprep.subr.bf16.mxu0 0
        %1449 = vmatpush2.bf16.xpose.msra.mxu0 0
        %1450 = vmatprep.subr.bf16.mxu0 0
        %1451 = vmatpush2.bf16.xpose.msra.mxu0 0
        %1452 = vmatprep.subr.bf16.mxu0 0
        %1453 = vmatpush2.bf16.xpose.msra.mxu0 0
        %1454 = vmatprep.subr.bf16.mxu0 0
        %1455 = vmatpush2.bf16.xpose.msra.mxu0 0
        %1456 = vmatprep.mubr.bf16.mxu0 0
        %1457 = vmatmul.mubr.bf16.gmra.mxu0 %v1419
        %v1458 = vpop.f32.mrf.mxu0
        %v1459 = vadd.f32 %v1410, %v1458
        %v1460 = vpop.f32.mrf.mxu0
        %v1461 = vpop.f32.mrf.mxu0
        %v1462 = vadd.f32 %v1411, %v1461
        %v1463 = vpop.f32.mrf.mxu0
        %1464 = vdwg.mxu0
        %1466 = vrot.lane.b32.xlu0 %v1406, 104
        %v1467 = vpop.permute.xlu0 %1466
        %1469 = vrot.lane.b32.xlu0 %v1408, 72
        %v1470 = vpop.permute.xlu0 %1469
        %v1472 = vsel %vm343, %v1467, 0
        %v1475 = vsel %vm343, %v1470, 0
        %1477 = vmatprep.subr.bf16.mxu0 0
        %1478 = vmatpush1.bf16.xpose.msra.mxu0 0
        %1479 = vmatprep.subr.bf16.mxu0 0
        %1480 = vmatpush1.bf16.xpose.msra.mxu0 0
        %1481 = vmatprep.subr.bf16.mxu0 0
        %1482 = vmatpush1.bf16.xpose.msra.mxu0 0
        %1483 = vmatprep.subr.bf16.mxu0 0
        %1484 = vmatpush1.bf16.xpose.msra.mxu0 0
        %1485 = vmatprep.subr.bf16.mxu0 0
        %1486 = vmatpush1.bf16.xpose.msra.mxu0 0
        %1487 = vmatprep.subr.bf16.mxu0 0
        %1488 = vmatpush1.bf16.xpose.msra.mxu0 0
        %1489 = vmatprep.subr.bf16.mxu0 0
        %1490 = vmatpush1.bf16.xpose.msra.mxu0 0
        %1491 = vmatprep.subr.bf16.mxu0 0
        %1492 = vmatpush1.bf16.xpose.msra.mxu0 %v1475
        %1493 = vmatprep.subr.bf16.mxu0 0
        %1494 = vmatpush2.bf16.xpose.msra.mxu0 0
        %1495 = vmatprep.subr.bf16.mxu0 0
        %1496 = vmatpush2.bf16.xpose.msra.mxu0 0
        %1497 = vmatprep.subr.bf16.mxu0 0
        %1498 = vmatpush2.bf16.xpose.msra.mxu0 0
        %1499 = vmatprep.subr.bf16.mxu0 0
        %1500 = vmatpush2.bf16.xpose.msra.mxu0 0
        %1501 = vmatprep.subr.bf16.mxu0 0
        %1502 = vmatpush2.bf16.xpose.msra.mxu0 0
        %1503 = vmatprep.subr.bf16.mxu0 0
        %1504 = vmatpush2.bf16.xpose.msra.mxu0 0
        %1505 = vmatprep.subr.bf16.mxu0 0
        %1506 = vmatpush2.bf16.xpose.msra.mxu0 0
        %1507 = vmatprep.subr.bf16.mxu0 0
        %1508 = vmatpush2.bf16.xpose.msra.mxu0 0
        %1509 = vmatprep.mubr.bf16.mxu0 0
        %1510 = vmatmul.mubr.bf16.gmra.mxu0 %v1472
        %v1511 = vpop.f32.mrf.mxu0
        %v1512 = vadd.f32 %v1410, %v1511
        %v1513 = vpop.f32.mrf.mxu0
        %v1514 = vpop.f32.mrf.mxu0
        %v1515 = vadd.f32 %v1411, %v1514
        %v1516 = vpop.f32.mrf.mxu0
        %1517 = vdwg.mxu0
        %v1518 = vsel %vm520, %v1459, -inf
        %1519 = vmax.xlane.f32.xlu0 %v1518
        %v1520 = vpop.xlane.xlu0 %1519
        %v1521 = vsel %vm520, %v1462, -inf
        %1522 = vmax.xlane.f32.xlu0 %v1521
        %v1523 = vpop.xlane.xlu0 %1522
        %v1524 = vsel %vm520, %v1512, -inf
        %1525 = vmax.xlane.f32.xlu0 %v1524
        %v1526 = vpop.xlane.xlu0 %1525
        %v1527 = vsel %vm520, %v1515, -inf
        %1528 = vmax.xlane.f32.xlu0 %v1527
        %v1529 = vpop.xlane.xlu0 %1528
        %v1530 = vsub.f32 %v1459, %v1520
        %v1531 = vsub.f32 %v1462, %v1523
        %v1532 = vsub.f32 %v1512, %v1526
        %v1533 = vsub.f32 %v1515, %v1529
        %v1534 = vmul.f32 %v1530, 1.442695
        %v1535 = vpow.pop %v1534
        %v1536 = vmul.f32 %v1531, 1.442695
        %v1537 = vpow.pop %v1536
        %v1538 = vmul.f32 %v1532, 1.442695
        %v1539 = vpow.pop %v1538
        %v1540 = vmul.f32 %v1533, 1.442695
        %v1541 = vpow.pop %v1540
        %v1542 = vsel %vm520, %v1535, 0.0
        %1543 = vadd.xlane.f32.xlu0 %v1542
        %v1544 = vpop.xlane.xlu0 %1543
        %v1545 = vsel %vm520, %v1537, 0.0
        %1546 = vadd.xlane.f32.xlu0 %v1545
        %v1547 = vpop.xlane.xlu0 %1546
        %v1548 = vsel %vm520, %v1539, 0.0
        %1549 = vadd.xlane.f32.xlu0 %v1548
        %v1550 = vpop.xlane.xlu0 %1549
        %v1551 = vsel %vm520, %v1541, 0.0
        %1552 = vadd.xlane.f32.xlu0 %v1551
        %v1553 = vpop.xlane.xlu0 %1552
        %v1554 = vrcp.pop %v1544
        %v1555 = vrcp.pop %v1547
        %v1556 = vrcp.pop %v1550
        %v1557 = vrcp.pop %v1553
        %v1558 = vmul.f32 %v1535, %v1554
        %v1559 = vmul.f32 %v1537, %v1555
        %v1560 = vmul.f32 %v1539, %v1556
        %v1561 = vmul.f32 %v1541, %v1557
        %v1562 = vpack.c.bf16 %v1559, %v1558
        %v1563 = vpack.c.bf16 %v1561, %v1560
        %1564 = vrot.lane.b32.xlu0 %v567, 40
        %v1565 = vpop.permute.xlu0 %1564
        %v1568 = vsel %vm520, %v1562, 0
        %1570 = vmatprep.subr.bf16.mxu0 0
        %1571 = vmatpush1.bf16.msra.mxu0 0
        %1572 = vmatprep.subr.bf16.mxu0 0
        %1573 = vmatpush1.bf16.msra.mxu0 0
        %1574 = vmatprep.subr.bf16.mxu0 0
        %1575 = vmatpush1.bf16.msra.mxu0 0
        %1576 = vmatprep.subr.bf16.mxu0 0
        %1577 = vmatpush1.bf16.msra.mxu0 0
        %1578 = vmatprep.subr.bf16.mxu0 0
        %1579 = vmatpush1.bf16.msra.mxu0 0
        %1580 = vmatprep.subr.bf16.mxu0 0
        %1581 = vmatpush1.bf16.msra.mxu0 0
        %1582 = vmatprep.subr.bf16.mxu0 0
        %1583 = vmatpush1.bf16.msra.mxu0 0
        %1584 = vmatprep.subr.bf16.mxu0 0
        %1585 = vmatpush1.bf16.msra.mxu0 %v1565
        %1586 = vmatprep.subr.bf16.mxu0 0
        %1587 = vmatpush2.bf16.msra.mxu0 0
        %1588 = vmatprep.subr.bf16.mxu0 0
        %1589 = vmatpush2.bf16.msra.mxu0 0
        %1590 = vmatprep.subr.bf16.mxu0 0
        %1591 = vmatpush2.bf16.msra.mxu0 0
        %1592 = vmatprep.subr.bf16.mxu0 0
        %1593 = vmatpush2.bf16.msra.mxu0 0
        %1594 = vmatprep.subr.bf16.mxu0 0
        %1595 = vmatpush2.bf16.msra.mxu0 0
        %1596 = vmatprep.subr.bf16.mxu0 0
        %1597 = vmatpush2.bf16.msra.mxu0 0
        %1598 = vmatprep.subr.bf16.mxu0 0
        %1599 = vmatpush2.bf16.msra.mxu0 0
        %1600 = vmatprep.subr.bf16.mxu0 0
        %1601 = vmatpush2.bf16.msra.mxu0 0
        %1602 = vmatprep.mubr.bf16.mxu0 0
        %1603 = vmatmul.mubr.bf16.gmra.mxu0 %v1568
        %v1604 = vpop.f32.mrf.mxu0
        %v1605 = vadd.f32 0.0, %v1604
        %v1606 = vpop.f32.mrf.mxu0
        %v1607 = vpop.f32.mrf.mxu0
        %v1608 = vadd.f32 0.0, %v1607
        %v1609 = vpop.f32.mrf.mxu0
        %1610 = vdwg.mxu0
        %1611 = vrot.lane.b32.xlu0 %v568, 40
        %v1612 = vpop.permute.xlu0 %1611
        %v1615 = vsel %vm520, %v1563, 0
        %1617 = vmatprep.subr.bf16.mxu0 0
        %1618 = vmatpush1.bf16.msra.mxu0 0
        %1619 = vmatprep.subr.bf16.mxu0 0
        %1620 = vmatpush1.bf16.msra.mxu0 0
        %1621 = vmatprep.subr.bf16.mxu0 0
        %1622 = vmatpush1.bf16.msra.mxu0 0
        %1623 = vmatprep.subr.bf16.mxu0 0
        %1624 = vmatpush1.bf16.msra.mxu0 0
        %1625 = vmatprep.subr.bf16.mxu0 0
        %1626 = vmatpush1.bf16.msra.mxu0 0
        %1627 = vmatprep.subr.bf16.mxu0 0
        %1628 = vmatpush1.bf16.msra.mxu0 0
        %1629 = vmatprep.subr.bf16.mxu0 0
        %1630 = vmatpush1.bf16.msra.mxu0 0
        %1631 = vmatprep.subr.bf16.mxu0 0
        %1632 = vmatpush1.bf16.msra.mxu0 %v1612
        %1633 = vmatprep.subr.bf16.mxu0 0
        %1634 = vmatpush2.bf16.msra.mxu0 0
        %1635 = vmatprep.subr.bf16.mxu0 0
        %1636 = vmatpush2.bf16.msra.mxu0 0
        %1637 = vmatprep.subr.bf16.mxu0 0
        %1638 = vmatpush2.bf16.msra.mxu0 0
        %1639 = vmatprep.subr.bf16.mxu0 0
        %1640 = vmatpush2.bf16.msra.mxu0 0
        %1641 = vmatprep.subr.bf16.mxu0 0
        %1642 = vmatpush2.bf16.msra.mxu0 0
        %1643 = vmatprep.subr.bf16.mxu0 0
        %1644 = vmatpush2.bf16.msra.mxu0 0
        %1645 = vmatprep.subr.bf16.mxu0 0
        %1646 = vmatpush2.bf16.msra.mxu0 0
        %1647 = vmatprep.subr.bf16.mxu0 0
        %1648 = vmatpush2.bf16.msra.mxu0 0
        %1649 = vmatprep.mubr.bf16.mxu0 0
        %1650 = vmatmul.mubr.bf16.gmra.mxu0 %v1615
        %v1651 = vpop.f32.mrf.mxu0
        %v1652 = vadd.f32 0.0, %v1651
        %v1653 = vpop.f32.mrf.mxu0
        %v1654 = vpop.f32.mrf.mxu0
        %v1655 = vadd.f32 0.0, %v1654
        %v1656 = vpop.f32.mrf.mxu0
        %1657 = vdwg.mxu0
        %1662 = vrot.lane.b32.xlu0 %v943, 8
        %v1663 = vpop.permute.xlu0 %1662
        %1664 = vrot.lane.b32.xlu0 %v946, 8
        %v1665 = vpop.permute.xlu0 %1664
        %1666 = vrot.lane.b32.xlu0 %v990, 8
        %v1667 = vpop.permute.xlu0 %1666
        %1668 = vrot.lane.b32.xlu0 %v993, 8
        %v1669 = vpop.permute.xlu0 %1668
        %1678 = vrot.lane.b32.xlu0 %v1274, 16
        %v1679 = vpop.permute.xlu0 %1678
        %1680 = vrot.lane.b32.xlu0 %v1277, 16
        %v1681 = vpop.permute.xlu0 %1680
        %1682 = vrot.lane.b32.xlu0 %v1321, 16
        %v1683 = vpop.permute.xlu0 %1682
        %1684 = vrot.lane.b32.xlu0 %v1324, 16
        %v1685 = vpop.permute.xlu0 %1684
        %1694 = vrot.lane.b32.xlu0 %v1605, 24
        %v1695 = vpop.permute.xlu0 %1694
        %1696 = vrot.lane.b32.xlu0 %v1608, 24
        %v1697 = vpop.permute.xlu0 %1696
        %1698 = vrot.lane.b32.xlu0 %v1652, 24
        %v1699 = vpop.permute.xlu0 %1698
        %1700 = vrot.lane.b32.xlu0 %v1655, 24
        %v1701 = vpop.permute.xlu0 %1700
        %v1706 = vsel %vm343, %v611, %v1663
        %v1707 = vsel %vm343, %v614, %v1665
        %v1708 = vsel %vm343, %v659, %v1667
        %v1709 = vsel %vm343, %v662, %v1669
        %v1710 = vsel %vm520, %v1706, %v1679
        %v1711 = vsel %vm520, %v1707, %v1681
        %v1712 = vsel %vm520, %v1708, %v1683
        %v1713 = vsel %vm520, %v1709, %v1685
        %vm1714 = vcmask 195584
        %v1715 = vsel %vm1714, %v1710, %v1695
        %v1716 = vsel %vm1714, %v1711, %v1697
        %v1717 = vsel %vm1714, %v1712, %v1699
        %v1718 = vsel %vm1714, %v1713, %v1701
        %1719 = vst.msk [vmem:[%s257] sm:$0xff] %vm283, %v1715
        %1720 = vst.msk [vmem:[%s257 + $0x8] sm:$0xff] %vm283, %v1716
        %1721 = vst.msk [vmem:[%s257 + $0x10] sm:$0xff] %vm283, %v1717
        %1722 = vst.msk [vmem:[%s257 + $0x18] sm:$0xff] %vm283, %v1718
        %s1723 = sand.u32 %s120, 1
        %s1724 = scalar_lea.sflag [#allocation4], %s1723
        %s1725 = sand.u32 %s120, 1
        %s1726 = smul.addr %s1725, 32
        %s1727 = scalar_lea.vmem [#allocation10], %s1726
        // Predicated region
        $region53: #{tpu_custom_call.1} parent=35 // pred_check
          %p1728 = pneg %p130
        $region54: #{tpu_custom_call.1} parent=35 // pred_check_branch
          %1730 = sbr.rel (%p1728) target = $region56
        $region55: #{tpu_custom_call.1} parent=35 // pred_region
          %s1731 = smul.u32 2, %s23
          %s1733 = ssub.s32 512, 512
          %1734 = vsyncadd %s1724, %s1733
          %s1735 = smul.addr %s1731, 2
          %s1736 = smul.addr %s1735, 128
          %s1737 = scalar_lea.hbm %s4, %s1736
          %s1738 = sshll.u32 %s1727, 4
          %s1739 = int_to_ptr.vmem [resolvable:$true] %s1738
          %1744 = dma.vmem_to_hbm [thread:$0]  %s1739, 512, %s1737, %s1724, 128, 128, 8
        $region56: #{tpu_custom_call.1} parent=35 // pred_fallthru
          _
      $region36: #{tpu_custom_call.1} parent=5 // pred_fallthru
        _
      %p1745 = scmp.le.s32.totalorder 2, %s18
      // Predicated region
      $region57: #{tpu_custom_call.1} parent=5 // pred_check
        %p1746 = pneg %p1745
      $region58: #{tpu_custom_call.1} parent=5 // pred_check_branch
        %1748 = sbr.rel (%p1746) target = $region60
      $region59: #{tpu_custom_call.1} parent=5 // pred_region
        %s1749 = ssub.s32 %s18, 2
        // Predicated region
        $region61: #{tpu_custom_call.1} parent=59 // pred_check
          %p1750 = pneg %p136
        $region62: #{tpu_custom_call.1} parent=59 // pred_check_branch
          %1752 = sbr.rel (%p1750) target = $region64
        $region63: #{tpu_custom_call.1} parent=59 // pred_region
          %s1753 = sand.u32 %s121, 1
          %s1754 = scalar_lea.sflag [#allocation4], %s1753
          %s1755 = sand.u32 %s121, 1
          %s1756 = smul.addr %s1755, 32
          %s1757 = scalar_lea.vmem [#allocation10], %s1756
          %1758 = dma.done %s1754, 512
        $region64: #{tpu_custom_call.1} parent=59 // pred_fallthru
          _
      $region60: #{tpu_custom_call.1} parent=5 // pred_fallthru
        _
    $region6: #{tpu_custom_call.1} parent=1 // loop_footer
      %s22 = sadd.s32 1, %s18
    $region7: #{tpu_custom_call.1} parent=1 // loop_footer_branch
      %17 = sbr.rel target = $region3
    $region8: #{tpu_custom_call.1} parent=1 // loop_exit
      _
    %1759 = vsyncpa [#allocation3], 1
    %s1760 = scalar_lea.sflag [#allocation3], 1
    %1761 = vsyncpa %s1760, 1
    %1762 = vsyncpa [#allocation8], 1
    %1763 = vsyncpa [#allocation4], 1
    %s1764 = scalar_lea.sflag [#allocation4], 1
    %1765 = vsyncpa %s1764, 1
    %1766 = vsyncpa [#allocation5], 1
    %s1767 = scalar_lea.sflag [#allocation5], 1
    %1768 = vsyncpa %s1767, 1

</llo_original>
